<compile_context>
chip_gen: v7x
topology: tpu7x:2x2x1
jax: 0.10.0
libtpu: 0.0.40
codegen_flags: <defaults>
</compile_context>

<pallas_src>
import functools

import jax
import jax.numpy as jnp
from jax import lax
from jax.experimental import pallas as pl
from jax.experimental.pallas import tpu as pltpu


# ----------------------------- Pallas hot path -------------------------------
def _convmm_kernel(cols_ref, w_ref, b_ref, o_ref, *, relu):
    """out[n] = relu(W @ cols[n] + b) for every batch element.

    cols_ref: (N, K, S)  bf16   K = Ci*k^3 on sublanes, S = Do*Ho*Wo on lanes
    w_ref:    (Co, K)    bf16   PyTorch weight flattened to (co, ci*k^3)
    b_ref:    (Co, 1)    f32
    o_ref:    (N, Co, S) bf16 (hidden layers) / f32 (final layer)
    """
    w = w_ref[...]
    b = b_ref[...]
    for n in range(cols_ref.shape[0]):            # N is tiny (2) -> static unroll
        acc = jnp.dot(w, cols_ref[n], preferred_element_type=jnp.float32)  # MXU
        acc = acc + b                              # lane-broadcast bias add (VPU)
        if relu:
            acc = jnp.maximum(acc, 0.0)
        o_ref[n] = acc.astype(o_ref.dtype)


def _conv_matmul(cols, w_p, b_p, *, relu, out_dtype):
    """cols (N,K,S) x w_p (Co,K) -> (N,Co,S) with bias + optional ReLU fused."""
    n, _, s = cols.shape
    co = w_p.shape[0]
    vmem = pl.BlockSpec(memory_space=pltpu.MemorySpace.VMEM)   # whole array in VMEM
    return pl.pallas_call(
        functools.partial(_convmm_kernel, relu=relu),
        out_shape=jax.ShapeDtypeStruct((n, co, s), out_dtype),
        in_specs=[vmem, vmem, vmem],
        out_specs=vmem,
    )(cols, w_p, b_p)


# ----------------------------- conv glue (JAX) -------------------------------
def _im2col3d_cm(x, k, stride, padding):
    """x: (N,C,D,H,W) -> cols: (N, C*k^3, Do*Ho*Wo), rows in (c, kd, kh, kw) order.

    Channel-major layout: only contiguous reshapes, no lane-crossing transpose.
    """
    n, c = x.shape[:2]
    if padding > 0:
        x = jnp.pad(x, ((0, 0), (0, 0)) + ((padding, padding),) * 3)
    dp, hp, wp = x.shape[2:]
    do = (dp - k) // stride + 1
    ho = (hp - k) // stride + 1
    wo = (wp - k) // stride + 1
    patches = []
    for kd in range(k):
        for kh in range(k):
            for kw in range(k):
                patches.append(x[:, :,
                                 kd:kd + stride * do:stride,
                                 kh:kh + stride * ho:stride,
                                 kw:kw + stride * wo:stride])
    cols = jnp.stack(patches, axis=2)                 # (N, C, k^3, Do, Ho, Wo)
    cols = cols.reshape(n, c * k ** 3, do * ho * wo)  # contiguous reshape only
    return cols, (do, ho, wo)


def conv3d_pallas(x, w_p, b_p, *, stride, padding, relu, out_dtype):
    """Matches nn.Conv3d(k=3). x: (N,Ci,D,H,W) bf16, w_p: (Co, Ci*27) bf16."""
    n = x.shape[0]
    co = w_p.shape[0]
    cols, (do, ho, wo) = _im2col3d_cm(x, 3, stride, padding)
    out = _conv_matmul(cols, w_p, b_p, relu=relu, out_dtype=out_dtype)
    return out.reshape(n, co, do, ho, wo)             # already channel-major NCDHW


def conv_transpose3d_pallas(x, w_p, b_p, *, stride, relu, out_dtype):
    """Matches nn.ConvTranspose3d(k=3, stride, padding=0, output_padding=0).
    Lowered to zero-dilated input + stride-1 conv (weights pre-flipped/packed)."""
    n, c, d, h, w = x.shape
    xd = jnp.zeros((n, c, (d - 1) * stride + 1, (h - 1) * stride + 1,
                    (w - 1) * stride + 1), x.dtype)
    xd = xd.at[:, :, ::stride, ::stride, ::stride].set(x)
    return conv3d_pallas(xd, w_p, b_p, stride=1, padding=2, relu=relu,
                         out_dtype=out_dtype)


# ------------------------ one-time weight packing -----------------------------
def _pack_conv(w, b):
    """(Co,Ci,k,k,k) f32 -> ((Co, Ci*k^3) bf16, (Co,1) f32)."""
    co = w.shape[0]
    return (jnp.asarray(w.reshape(co, -1), jnp.bfloat16),
            jnp.asarray(b, jnp.float32).reshape(co, 1))


def _pack_convT(w, b):
    """(Ci,Co,k,k,k) ConvTranspose weight -> equivalent forward-conv packing."""
    w_conv = jnp.flip(w, axis=(2, 3, 4)).transpose(1, 0, 2, 3, 4)   # (Co,Ci,k,k,k)
    return _pack_conv(w_conv, b)


def pack_unet_params(params):
    """Run once (outside the jitted forward): bf16 matmul-ready weights."""
    packed = {"enc": [], "dec": []}
    for (w1, b1, w2, b2) in params["enc"]:
        pw1, pb1 = _pack_conv(w1, b1)
        pw2, pb2 = _pack_conv(w2, b2)
        packed["enc"].append({"w1": pw1, "b1": pb1, "w2": pw2, "b2": pb2})
    for (wt, bt, w2, b2) in params["dec"]:
        pwt, pbt = _pack_convT(wt, bt)
        pw2, pb2 = _pack_conv(w2, b2)
        packed["dec"].append({"wt": pwt, "bt": pbt, "w2": pw2, "b2": pb2})
    wf, bf = params["final"]
    packed["fw"], packed["fb"] = _pack_conv(wf, bf)
    return packed


# ----------------------------- parameters ------------------------------------
def _conv_params(key, co, ci, k):
    fan_in = ci * k ** 3
    bound = 1.0 / float(fan_in) ** 0.5
    wk, bk = jax.random.split(key)
    w = jax.random.uniform(wk, (co, ci, k, k, k), jnp.float32, -bound, bound)
    b = jax.random.uniform(bk, (co,), jnp.float32, -bound, bound)
    return w, b


def _convT_params(key, ci, co, k):
    fan_in = ci * k ** 3
    bound = 1.0 / float(fan_in) ** 0.5
    wk, bk = jax.random.split(key)
    w = jax.random.uniform(wk, (ci, co, k, k, k), jnp.float32, -bound, bound)
    b = jax.random.uniform(bk, (co,), jnp.float32, -bound, bound)
    return w, b


def init_unet_params(key, in_channels, out_channels, channels):
    params = {"enc": [], "dec": []}
    ci = in_channels
    for c in channels:                         # EncoderBlock(ci, c, stride)
        key, k1, k2 = jax.random.split(key, 3)
        w1, b1 = _conv_params(k1, c, ci, 3)    # Conv3d(ci, c, 3, s=2, p=1)
        w2, b2 = _conv_params(k2, c, c, 3)     # Conv3d(c,  c, 3, s=2, p=1)
        params["enc"].append((w1, b1, w2, b2))
        ci = c
    rev = channels[::-1]
    for i in range(len(rev) - 1):              # DecoderBlock(rev[i], rev[i+1])
        key, k1, k2 = jax.random.split(key, 3)
        wt, bt = _convT_params(k1, rev[i], rev[i + 1], 3)          # ConvTranspose3d
        w2, b2 = _conv_params(k2, rev[i + 1], 2 * rev[i + 1], 3)   # Conv3d(2c,c,3,p=1)
        params["dec"].append((wt, bt, w2, b2))
    key, kf = jax.random.split(key)
    params["final"] = _conv_params(kf, out_channels, rev[-1], 3)   # Conv3d(c, out, 3)
    return params


# ----------------------------- UNet forward (Pallas) -------------------------
def unet_forward_pallas(x, packed):
    h = x.astype(jnp.bfloat16)                 # cast once before the 27x im2col
    skips = []
    for blk in packed["enc"]:
        h = conv3d_pallas(h, blk["w1"], blk["b1"], stride=2, padding=1,
                          relu=True, out_dtype=jnp.bfloat16)
        h = conv3d_pallas(h, blk["w2"], blk["b2"], stride=2, padding=1,
                          relu=True, out_dtype=jnp.bfloat16)
        skips.append(h)                        # EncoderBlock returns (out, out)
    for i, blk in enumerate(packed["dec"]):
        skip = skips[-(i + 2)]
        h = conv_transpose3d_pallas(h, blk["wt"], blk["bt"], stride=2,
                                    relu=True, out_dtype=jnp.bfloat16)
        h = jnp.concatenate([h, skip], axis=1)          # cat along channels
        h = conv3d_pallas(h, blk["w2"], blk["b2"], stride=1, padding=1,
                          relu=True, out_dtype=jnp.bfloat16)
    return conv3d_pallas(h, packed["fw"], packed["fb"], stride=1, padding=0,
                         relu=False, out_dtype=jnp.float32)


# ----------------------------- pure-JAX f32 reference ------------------------
def _conv3d_ref(x, w, b, stride, padding):
    out = lax.conv_general_dilated(
        x, w, window_strides=(stride,) * 3, padding=[(padding, padding)] * 3,
        dimension_numbers=("NCDHW", "OIDHW", "NCDHW"))
    return out + b.reshape(1, -1, 1, 1, 1)


def _conv_transpose3d_ref(x, w, b, stride):
    k = w.shape[2]
    w_conv = jnp.flip(w, axis=(2, 3, 4)).transpose(1, 0, 2, 3, 4)
    out = lax.conv_general_dilated(
        x, w_conv, window_strides=(1,) * 3, padding=[(k - 1, k - 1)] * 3,
        lhs_dilation=(stride,) * 3,
        dimension_numbers=("NCDHW", "OIDHW", "NCDHW"))
    return out + b.reshape(1, -1, 1, 1, 1)


def unet_forward_ref(x, params):
    skips = []
    h = x
    for (w1, b1, w2, b2) in params["enc"]:
        h = jnp.maximum(_conv3d_ref(h, w1, b1, 2, 1), 0.0)
        h = jnp.maximum(_conv3d_ref(h, w2, b2, 2, 1), 0.0)
        skips.append(h)
    for i, (wt, bt, w2, b2) in enumerate(params["dec"]):
        skip = skips[-(i + 2)]
        h = jnp.maximum(_conv_transpose3d_ref(h, wt, bt, 2), 0.0)
        h = jnp.concatenate([h, skip], axis=1)
        h = jnp.maximum(_conv3d_ref(h, w2, b2, 1, 1), 0.0)
    wf, bf = params["final"]
    return _conv3d_ref(h, wf, bf, 1, 0)


# ----------------------------------- main -------------------------------------
if __name__ == "__main__":
    in_channels, out_channels = 2, 2
    channels = [4, 8]
    strides = [2, 2]   # parity with the nn.Module signature; unused there too
    N, S = 2, 20       # 20 -> 10 -> 5 (skip) -> 3 -> 2 -> up 5 matches the skip

    key = jax.random.PRNGKey(0)
    pkey, xkey = jax.random.split(key)
    params = init_unet_params(pkey, in_channels, out_channels, channels)
    packed = pack_unet_params(params)          # one-time weight packing (hoisted)
    x = jax.random.normal(xkey, (N, in_channels, S, S, S), jnp.float32)

    fwd = jax.jit(unet_forward_pallas)
    out = jax.block_until_ready(fwd(x, packed))

    # sanity: shape matches the PyTorch module for this config, values finite, and
    # the bf16 Pallas path agrees with an independent f32 lax.conv reference.
    ref = jax.block_until_ready(unet_forward_ref(x, params))
    assert out.shape == (N, out_channels, 3, 3, 3), out.shape
    assert bool(jnp.all(jnp.isfinite(out)))
    assert bool(jnp.allclose(out, ref, rtol=3e-2, atol=3e-2)), \
        float(jnp.max(jnp.abs(out - ref)))

    print("KERNEL_OK")
</pallas_src>

<mosaic_0001>
module attributes {stable_mosaic.version = 11 : i64} {
  func.func @_convmm_kernel(%arg0: memref<2x54x1000xbf16, #tpu.memory_space<vmem>>, %arg1: memref<4x54xbf16, #tpu.memory_space<vmem>>, %arg2: memref<4x1xf32, #tpu.memory_space<vmem>>, %arg3: memref<2x4x1000xbf16, #tpu.memory_space<vmem>>) attributes {dimension_semantics = [], scalar_prefetch = 0 : i64, scratch_operands = 0 : i64, tpu.core_type = #tpu.core_type<tc>} {
    %c0 = arith.constant 0 : index
    %c0_0 = arith.constant 0 : index
    %0 = vector.load %arg1[%c0, %c0_0] : memref<4x54xbf16, #tpu.memory_space<vmem>>, vector<4x54xbf16>
    %c0_1 = arith.constant 0 : index
    %c0_2 = arith.constant 0 : index
    %1 = vector.load %arg2[%c0_1, %c0_2] : memref<4x1xf32, #tpu.memory_space<vmem>>, vector<4x1xf32>
    %c0_3 = arith.constant 0 : index
    %c0_4 = arith.constant 0 : index
    %c0_5 = arith.constant 0 : index
    %2 = vector.load %arg0[%c0_3, %c0_4, %c0_5] : memref<2x54x1000xbf16, #tpu.memory_space<vmem>>, vector<1x54x1000xbf16>
    %3 = vector.shape_cast %2 : vector<1x54x1000xbf16> to vector<54x1000xbf16>
    %cst = arith.constant dense<0.000000e+00> : vector<4x1000xf32>
    %4 = tpu.matmul %0, %3, %cst {dimension_numbers = #tpu.dot_dimension_numbers<[1], [0], [0], [1], [0, 0, 1, 1], [], []>} : vector<4x54xbf16>, vector<54x1000xbf16>, vector<4x1000xf32> -> vector<4x1000xf32>
    %5 = vector.broadcast %1 : vector<4x1xf32> to vector<4x1000xf32>
    %6 = arith.addf %4, %5 : vector<4x1000xf32>
    %cst_6 = arith.constant 0.000000e+00 : f32
    %7 = vector.broadcast %cst_6 : f32 to vector<4x1000xf32>
    %8 = arith.maximumf %6, %7 : vector<4x1000xf32>
    %9 = arith.truncf %8 : vector<4x1000xf32> to vector<4x1000xbf16>
    %c0_7 = arith.constant 0 : index
    %c0_8 = arith.constant 0 : index
    %c0_9 = arith.constant 0 : index
    %10 = vector.load %arg3[%c0_7, %c0_8, %c0_9] : memref<2x4x1000xbf16, #tpu.memory_space<vmem>>, vector<1x4x1000xbf16>
    %11 = vector.shape_cast %10 : vector<1x4x1000xbf16> to vector<4x1000xbf16>
    %12 = vector.shape_cast %9 : vector<4x1000xbf16> to vector<1x4x1000xbf16>
    tpu.vector_store %arg3[%c0_7, %c0_8, %c0_9], %12 {strides = array<i32>} : memref<2x4x1000xbf16, #tpu.memory_space<vmem>>, vector<1x4x1000xbf16>,
    %c1 = arith.constant 1 : index
    %c0_10 = arith.constant 0 : index
    %c0_11 = arith.constant 0 : index
    %13 = vector.load %arg0[%c1, %c0_10, %c0_11] : memref<2x54x1000xbf16, #tpu.memory_space<vmem>>, vector<1x54x1000xbf16>
    %14 = vector.shape_cast %13 : vector<1x54x1000xbf16> to vector<54x1000xbf16>
    %cst_12 = arith.constant dense<0.000000e+00> : vector<4x1000xf32>
    %15 = tpu.matmul %0, %14, %cst_12 {dimension_numbers = #tpu.dot_dimension_numbers<[1], [0], [0], [1], [0, 0, 1, 1], [], []>} : vector<4x54xbf16>, vector<54x1000xbf16>, vector<4x1000xf32> -> vector<4x1000xf32>
    %16 = vector.broadcast %1 : vector<4x1xf32> to vector<4x1000xf32>
    %17 = arith.addf %15, %16 : vector<4x1000xf32>
    %cst_13 = arith.constant 0.000000e+00 : f32
    %18 = vector.broadcast %cst_13 : f32 to vector<4x1000xf32>
    %19 = arith.maximumf %17, %18 : vector<4x1000xf32>
    %20 = arith.truncf %19 : vector<4x1000xf32> to vector<4x1000xbf16>
    %c1_14 = arith.constant 1 : index
    %c0_15 = arith.constant 0 : index
    %c0_16 = arith.constant 0 : index
    %21 = vector.load %arg3[%c1_14, %c0_15, %c0_16] : memref<2x4x1000xbf16, #tpu.memory_space<vmem>>, vector<1x4x1000xbf16>
    %22 = vector.shape_cast %21 : vector<1x4x1000xbf16> to vector<4x1000xbf16>
    %23 = vector.shape_cast %20 : vector<4x1000xbf16> to vector<1x4x1000xbf16>
    tpu.vector_store %arg3[%c1_14, %c0_15, %c0_16], %23 {strides = array<i32>} : memref<2x4x1000xbf16, #tpu.memory_space<vmem>>, vector<1x4x1000xbf16>,
    return
  }
}

module attributes {stable_mosaic.version = 11 : i64} {
  func.func @_convmm_kernel(%arg0: memref<2x108x125xbf16, #tpu.memory_space<vmem>>, %arg1: memref<4x108xbf16, #tpu.memory_space<vmem>>, %arg2: memref<4x1xf32, #tpu.memory_space<vmem>>, %arg3: memref<2x4x125xbf16, #tpu.memory_space<vmem>>) attributes {dimension_semantics = [], scalar_prefetch = 0 : i64, scratch_operands = 0 : i64, tpu.core_type = #tpu.core_type<tc>} {
    %c0 = arith.constant 0 : index
    %c0_0 = arith.constant 0 : index
    %0 = vector.load %arg1[%c0, %c0_0] : memref<4x108xbf16, #tpu.memory_space<vmem>>, vector<4x108xbf16>
    %c0_1 = arith.constant 0 : index
    %c0_2 = arith.constant 0 : index
    %1 = vector.load %arg2[%c0_1, %c0_2] : memref<4x1xf32, #tpu.memory_space<vmem>>, vector<4x1xf32>
    %c0_3 = arith.constant 0 : index
    %c0_4 = arith.constant 0 : index
    %c0_5 = arith.constant 0 : index
    %2 = vector.load %arg0[%c0_3, %c0_4, %c0_5] : memref<2x108x125xbf16, #tpu.memory_space<vmem>>, vector<1x108x125xbf16>
    %3 = vector.shape_cast %2 : vector<1x108x125xbf16> to vector<108x125xbf16>
    %cst = arith.constant dense<0.000000e+00> : vector<4x125xf32>
    %4 = tpu.matmul %0, %3, %cst {dimension_numbers = #tpu.dot_dimension_numbers<[1], [0], [0], [1], [0, 0, 1, 1], [], []>} : vector<4x108xbf16>, vector<108x125xbf16>, vector<4x125xf32> -> vector<4x125xf32>
    %5 = vector.broadcast %1 : vector<4x1xf32> to vector<4x125xf32>
    %6 = arith.addf %4, %5 : vector<4x125xf32>
    %cst_6 = arith.constant 0.000000e+00 : f32
    %7 = vector.broadcast %cst_6 : f32 to vector<4x125xf32>
    %8 = arith.maximumf %6, %7 : vector<4x125xf32>
    %9 = arith.truncf %8 : vector<4x125xf32> to vector<4x125xbf16>
    %c0_7 = arith.constant 0 : index
    %c0_8 = arith.constant 0 : index
    %c0_9 = arith.constant 0 : index
    %10 = vector.load %arg3[%c0_7, %c0_8, %c0_9] : memref<2x4x125xbf16, #tpu.memory_space<vmem>>, vector<1x4x125xbf16>
    %11 = vector.shape_cast %10 : vector<1x4x125xbf16> to vector<4x125xbf16>
    %12 = vector.shape_cast %9 : vector<4x125xbf16> to vector<1x4x125xbf16>
    tpu.vector_store %arg3[%c0_7, %c0_8, %c0_9], %12 {strides = array<i32>} : memref<2x4x125xbf16, #tpu.memory_space<vmem>>, vector<1x4x125xbf16>,
    %c1 = arith.constant 1 : index
    %c0_10 = arith.constant 0 : index
    %c0_11 = arith.constant 0 : index
    %13 = vector.load %arg0[%c1, %c0_10, %c0_11] : memref<2x108x125xbf16, #tpu.memory_space<vmem>>, vector<1x108x125xbf16>
    %14 = vector.shape_cast %13 : vector<1x108x125xbf16> to vector<108x125xbf16>
    %cst_12 = arith.constant dense<0.000000e+00> : vector<4x125xf32>
    %15 = tpu.matmul %0, %14, %cst_12 {dimension_numbers = #tpu.dot_dimension_numbers<[1], [0], [0], [1], [0, 0, 1, 1], [], []>} : vector<4x108xbf16>, vector<108x125xbf16>, vector<4x125xf32> -> vector<4x125xf32>
    %16 = vector.broadcast %1 : vector<4x1xf32> to vector<4x125xf32>
    %17 = arith.addf %15, %16 : vector<4x125xf32>
    %cst_13 = arith.constant 0.000000e+00 : f32
    %18 = vector.broadcast %cst_13 : f32 to vector<4x125xf32>
    %19 = arith.maximumf %17, %18 : vector<4x125xf32>
    %20 = arith.truncf %19 : vector<4x125xf32> to vector<4x125xbf16>
    %c1_14 = arith.constant 1 : index
    %c0_15 = arith.constant 0 : index
    %c0_16 = arith.constant 0 : index
    %21 = vector.load %arg3[%c1_14, %c0_15, %c0_16] : memref<2x4x125xbf16, #tpu.memory_space<vmem>>, vector<1x4x125xbf16>
    %22 = vector.shape_cast %21 : vector<1x4x125xbf16> to vector<4x125xbf16>
    %23 = vector.shape_cast %20 : vector<4x125xbf16> to vector<1x4x125xbf16>
    tpu.vector_store %arg3[%c1_14, %c0_15, %c0_16], %23 {strides = array<i32>} : memref<2x4x125xbf16, #tpu.memory_space<vmem>>, vector<1x4x125xbf16>,
    return
  }
}

module attributes {stable_mosaic.version = 11 : i64} {
  func.func @_convmm_kernel(%arg0: memref<2x108x27xbf16, #tpu.memory_space<vmem>>, %arg1: memref<8x108xbf16, #tpu.memory_space<vmem>>, %arg2: memref<8x1xf32, #tpu.memory_space<vmem>>, %arg3: memref<2x8x27xbf16, #tpu.memory_space<vmem>>) attributes {dimension_semantics = [], scalar_prefetch = 0 : i64, scratch_operands = 0 : i64, tpu.core_type = #tpu.core_type<tc>} {
    %c0 = arith.constant 0 : index
    %c0_0 = arith.constant 0 : index
    %0 = vector.load %arg1[%c0, %c0_0] : memref<8x108xbf16, #tpu.memory_space<vmem>>, vector<8x108xbf16>
    %c0_1 = arith.constant 0 : index
    %c0_2 = arith.constant 0 : index
    %1 = vector.load %arg2[%c0_1, %c0_2] : memref<8x1xf32, #tpu.memory_space<vmem>>, vector<8x1xf32>
    %c0_3 = arith.constant 0 : index
    %c0_4 = arith.constant 0 : index
    %c0_5 = arith.constant 0 : index
    %2 = vector.load %arg0[%c0_3, %c0_4, %c0_5] : memref<2x108x27xbf16, #tpu.memory_space<vmem>>, vector<1x108x27xbf16>
    %3 = vector.shape_cast %2 : vector<1x108x27xbf16> to vector<108x27xbf16>
    %cst = arith.constant dense<0.000000e+00> : vector<8x27xf32>
    %4 = tpu.matmul %0, %3, %cst {dimension_numbers = #tpu.dot_dimension_numbers<[1], [0], [0], [1], [0, 0, 1, 1], [], []>} : vector<8x108xbf16>, vector<108x27xbf16>, vector<8x27xf32> -> vector<8x27xf32>
    %5 = vector.broadcast %1 : vector<8x1xf32> to vector<8x27xf32>
    %6 = arith.addf %4, %5 : vector<8x27xf32>
    %cst_6 = arith.constant 0.000000e+00 : f32
    %7 = vector.broadcast %cst_6 : f32 to vector<8x27xf32>
    %8 = arith.maximumf %6, %7 : vector<8x27xf32>
    %9 = arith.truncf %8 : vector<8x27xf32> to vector<8x27xbf16>
    %c0_7 = arith.constant 0 : index
    %c0_8 = arith.constant 0 : index
    %c0_9 = arith.constant 0 : index
    %10 = vector.load %arg3[%c0_7, %c0_8, %c0_9] : memref<2x8x27xbf16, #tpu.memory_space<vmem>>, vector<1x8x27xbf16>
    %11 = vector.shape_cast %10 : vector<1x8x27xbf16> to vector<8x27xbf16>
    %12 = vector.shape_cast %9 : vector<8x27xbf16> to vector<1x8x27xbf16>
    tpu.vector_store %arg3[%c0_7, %c0_8, %c0_9], %12 {strides = array<i32>} : memref<2x8x27xbf16, #tpu.memory_space<vmem>>, vector<1x8x27xbf16>,
    %c1 = arith.constant 1 : index
    %c0_10 = arith.constant 0 : index
    %c0_11 = arith.constant 0 : index
    %13 = vector.load %arg0[%c1, %c0_10, %c0_11] : memref<2x108x27xbf16, #tpu.memory_space<vmem>>, vector<1x108x27xbf16>
    %14 = vector.shape_cast %13 : vector<1x108x27xbf16> to vector<108x27xbf16>
    %cst_12 = arith.constant dense<0.000000e+00> : vector<8x27xf32>
    %15 = tpu.matmul %0, %14, %cst_12 {dimension_numbers = #tpu.dot_dimension_numbers<[1], [0], [0], [1], [0, 0, 1, 1], [], []>} : vector<8x108xbf16>, vector<108x27xbf16>, vector<8x27xf32> -> vector<8x27xf32>
    %16 = vector.broadcast %1 : vector<8x1xf32> to vector<8x27xf32>
    %17 = arith.addf %15, %16 : vector<8x27xf32>
    %cst_13 = arith.constant 0.000000e+00 : f32
    %18 = vector.broadcast %cst_13 : f32 to vector<8x27xf32>
    %19 = arith.maximumf %17, %18 : vector<8x27xf32>
    %20 = arith.truncf %19 : vector<8x27xf32> to vector<8x27xbf16>
    %c1_14 = arith.constant 1 : index
    %c0_15 = arith.constant 0 : index
    %c0_16 = arith.constant 0 : index
    %21 = vector.load %arg3[%c1_14, %c0_15, %c0_16] : memref<2x8x27xbf16, #tpu.memory_space<vmem>>, vector<1x8x27xbf16>
    %22 = vector.shape_cast %21 : vector<1x8x27xbf16> to vector<8x27xbf16>
    %23 = vector.shape_cast %20 : vector<8x27xbf16> to vector<1x8x27xbf16>
    tpu.vector_store %arg3[%c1_14, %c0_15, %c0_16], %23 {strides = array<i32>} : memref<2x8x27xbf16, #tpu.memory_space<vmem>>, vector<1x8x27xbf16>,
    return
  }
}

module attributes {stable_mosaic.version = 11 : i64} {
  func.func @_convmm_kernel(%arg0: memref<2x216x8xbf16, #tpu.memory_space<vmem>>, %arg1: memref<8x216xbf16, #tpu.memory_space<vmem>>, %arg2: memref<8x1xf32, #tpu.memory_space<vmem>>, %arg3: memref<2x8x8xbf16, #tpu.memory_space<vmem>>) attributes {dimension_semantics = [], scalar_prefetch = 0 : i64, scratch_operands = 0 : i64, tpu.core_type = #tpu.core_type<tc>} {
    %c0 = arith.constant 0 : index
    %c0_0 = arith.constant 0 : index
    %0 = vector.load %arg1[%c0, %c0_0] : memref<8x216xbf16, #tpu.memory_space<vmem>>, vector<8x216xbf16>
    %c0_1 = arith.constant 0 : index
    %c0_2 = arith.constant 0 : index
    %1 = vector.load %arg2[%c0_1, %c0_2] : memref<8x1xf32, #tpu.memory_space<vmem>>, vector<8x1xf32>
    %c0_3 = arith.constant 0 : index
    %c0_4 = arith.constant 0 : index
    %c0_5 = arith.constant 0 : index
    %2 = vector.load %arg0[%c0_3, %c0_4, %c0_5] : memref<2x216x8xbf16, #tpu.memory_space<vmem>>, vector<1x216x8xbf16>
    %3 = vector.shape_cast %2 : vector<1x216x8xbf16> to vector<216x8xbf16>
    %cst = arith.constant dense<0.000000e+00> : vector<8x8xf32>
    %4 = tpu.matmul %0, %3, %cst {dimension_numbers = #tpu.dot_dimension_numbers<[1], [0], [0], [1], [0, 0, 1, 1], [], []>} : vector<8x216xbf16>, vector<216x8xbf16>, vector<8x8xf32> -> vector<8x8xf32>
    %5 = vector.broadcast %1 : vector<8x1xf32> to vector<8x8xf32>
    %6 = arith.addf %4, %5 : vector<8x8xf32>
    %cst_6 = arith.constant 0.000000e+00 : f32
    %7 = vector.broadcast %cst_6 : f32 to vector<8x8xf32>
    %8 = arith.maximumf %6, %7 : vector<8x8xf32>
    %9 = arith.truncf %8 : vector<8x8xf32> to vector<8x8xbf16>
    %c0_7 = arith.constant 0 : index
    %c0_8 = arith.constant 0 : index
    %c0_9 = arith.constant 0 : index
    %10 = vector.load %arg3[%c0_7, %c0_8, %c0_9] : memref<2x8x8xbf16, #tpu.memory_space<vmem>>, vector<1x8x8xbf16>
    %11 = vector.shape_cast %10 : vector<1x8x8xbf16> to vector<8x8xbf16>
    %12 = vector.shape_cast %9 : vector<8x8xbf16> to vector<1x8x8xbf16>
    tpu.vector_store %arg3[%c0_7, %c0_8, %c0_9], %12 {strides = array<i32>} : memref<2x8x8xbf16, #tpu.memory_space<vmem>>, vector<1x8x8xbf16>,
    %c1 = arith.constant 1 : index
    %c0_10 = arith.constant 0 : index
    %c0_11 = arith.constant 0 : index
    %13 = vector.load %arg0[%c1, %c0_10, %c0_11] : memref<2x216x8xbf16, #tpu.memory_space<vmem>>, vector<1x216x8xbf16>
    %14 = vector.shape_cast %13 : vector<1x216x8xbf16> to vector<216x8xbf16>
    %cst_12 = arith.constant dense<0.000000e+00> : vector<8x8xf32>
    %15 = tpu.matmul %0, %14, %cst_12 {dimension_numbers = #tpu.dot_dimension_numbers<[1], [0], [0], [1], [0, 0, 1, 1], [], []>} : vector<8x216xbf16>, vector<216x8xbf16>, vector<8x8xf32> -> vector<8x8xf32>
    %16 = vector.broadcast %1 : vector<8x1xf32> to vector<8x8xf32>
    %17 = arith.addf %15, %16 : vector<8x8xf32>
    %cst_13 = arith.constant 0.000000e+00 : f32
    %18 = vector.broadcast %cst_13 : f32 to vector<8x8xf32>
    %19 = arith.maximumf %17, %18 : vector<8x8xf32>
    %20 = arith.truncf %19 : vector<8x8xf32> to vector<8x8xbf16>
    %c1_14 = arith.constant 1 : index
    %c0_15 = arith.constant 0 : index
    %c0_16 = arith.constant 0 : index
    %21 = vector.load %arg3[%c1_14, %c0_15, %c0_16] : memref<2x8x8xbf16, #tpu.memory_space<vmem>>, vector<1x8x8xbf16>
    %22 = vector.shape_cast %21 : vector<1x8x8xbf16> to vector<8x8xbf16>
    %23 = vector.shape_cast %20 : vector<8x8xbf16> to vector<1x8x8xbf16>
    tpu.vector_store %arg3[%c1_14, %c0_15, %c0_16], %23 {strides = array<i32>} : memref<2x8x8xbf16, #tpu.memory_space<vmem>>, vector<1x8x8xbf16>,
    return
  }
}

module attributes {stable_mosaic.version = 11 : i64} {
  func.func @_convmm_kernel(%arg0: memref<2x216x125xbf16, #tpu.memory_space<vmem>>, %arg1: memref<4x216xbf16, #tpu.memory_space<vmem>>, %arg2: memref<4x1xf32, #tpu.memory_space<vmem>>, %arg3: memref<2x4x125xbf16, #tpu.memory_space<vmem>>) attributes {dimension_semantics = [], scalar_prefetch = 0 : i64, scratch_operands = 0 : i64, tpu.core_type = #tpu.core_type<tc>} {
    %c0 = arith.constant 0 : index
    %c0_0 = arith.constant 0 : index
    %0 = vector.load %arg1[%c0, %c0_0] : memref<4x216xbf16, #tpu.memory_space<vmem>>, vector<4x216xbf16>
    %c0_1 = arith.constant 0 : index
    %c0_2 = arith.constant 0 : index
    %1 = vector.load %arg2[%c0_1, %c0_2] : memref<4x1xf32, #tpu.memory_space<vmem>>, vector<4x1xf32>
    %c0_3 = arith.constant 0 : index
    %c0_4 = arith.constant 0 : index
    %c0_5 = arith.constant 0 : index
    %2 = vector.load %arg0[%c0_3, %c0_4, %c0_5] : memref<2x216x125xbf16, #tpu.memory_space<vmem>>, vector<1x216x125xbf16>
    %3 = vector.shape_cast %2 : vector<1x216x125xbf16> to vector<216x125xbf16>
    %cst = arith.constant dense<0.000000e+00> : vector<4x125xf32>
    %4 = tpu.matmul %0, %3, %cst {dimension_numbers = #tpu.dot_dimension_numbers<[1], [0], [0], [1], [0, 0, 1, 1], [], []>} : vector<4x216xbf16>, vector<216x125xbf16>, vector<4x125xf32> -> vector<4x125xf32>
    %5 = vector.broadcast %1 : vector<4x1xf32> to vector<4x125xf32>
    %6 = arith.addf %4, %5 : vector<4x125xf32>
    %cst_6 = arith.constant 0.000000e+00 : f32
    %7 = vector.broadcast %cst_6 : f32 to vector<4x125xf32>
    %8 = arith.maximumf %6, %7 : vector<4x125xf32>
    %9 = arith.truncf %8 : vector<4x125xf32> to vector<4x125xbf16>
    %c0_7 = arith.constant 0 : index
    %c0_8 = arith.constant 0 : index
    %c0_9 = arith.constant 0 : index
    %10 = vector.load %arg3[%c0_7, %c0_8, %c0_9] : memref<2x4x125xbf16, #tpu.memory_space<vmem>>, vector<1x4x125xbf16>
    %11 = vector.shape_cast %10 : vector<1x4x125xbf16> to vector<4x125xbf16>
    %12 = vector.shape_cast %9 : vector<4x125xbf16> to vector<1x4x125xbf16>
    tpu.vector_store %arg3[%c0_7, %c0_8, %c0_9], %12 {strides = array<i32>} : memref<2x4x125xbf16, #tpu.memory_space<vmem>>, vector<1x4x125xbf16>,
    %c1 = arith.constant 1 : index
    %c0_10 = arith.constant 0 : index
    %c0_11 = arith.constant 0 : index
    %13 = vector.load %arg0[%c1, %c0_10, %c0_11] : memref<2x216x125xbf16, #tpu.memory_space<vmem>>, vector<1x216x125xbf16>
    %14 = vector.shape_cast %13 : vector<1x216x125xbf16> to vector<216x125xbf16>
    %cst_12 = arith.constant dense<0.000000e+00> : vector<4x125xf32>
    %15 = tpu.matmul %0, %14, %cst_12 {dimension_numbers = #tpu.dot_dimension_numbers<[1], [0], [0], [1], [0, 0, 1, 1], [], []>} : vector<4x216xbf16>, vector<216x125xbf16>, vector<4x125xf32> -> vector<4x125xf32>
    %16 = vector.broadcast %1 : vector<4x1xf32> to vector<4x125xf32>
    %17 = arith.addf %15, %16 : vector<4x125xf32>
    %cst_13 = arith.constant 0.000000e+00 : f32
    %18 = vector.broadcast %cst_13 : f32 to vector<4x125xf32>
    %19 = arith.maximumf %17, %18 : vector<4x125xf32>
    %20 = arith.truncf %19 : vector<4x125xf32> to vector<4x125xbf16>
    %c1_14 = arith.constant 1 : index
    %c0_15 = arith.constant 0 : index
    %c0_16 = arith.constant 0 : index
    %21 = vector.load %arg3[%c1_14, %c0_15, %c0_16] : memref<2x4x125xbf16, #tpu.memory_space<vmem>>, vector<1x4x125xbf16>
    %22 = vector.shape_cast %21 : vector<1x4x125xbf16> to vector<4x125xbf16>
    %23 = vector.shape_cast %20 : vector<4x125xbf16> to vector<1x4x125xbf16>
    tpu.vector_store %arg3[%c1_14, %c0_15, %c0_16], %23 {strides = array<i32>} : memref<2x4x125xbf16, #tpu.memory_space<vmem>>, vector<1x4x125xbf16>,
    return
  }
}

module attributes {stable_mosaic.version = 11 : i64} {
  func.func @_convmm_kernel(%arg0: memref<2x108x27xbf16, #tpu.memory_space<vmem>>, %arg1: memref<2x108xbf16, #tpu.memory_space<vmem>>, %arg2: memref<2x1xf32, #tpu.memory_space<vmem>>, %arg3: memref<2x2x27xf32, #tpu.memory_space<vmem>>) attributes {dimension_semantics = [], scalar_prefetch = 0 : i64, scratch_operands = 0 : i64, tpu.core_type = #tpu.core_type<tc>} {
    %c0 = arith.constant 0 : index
    %c0_0 = arith.constant 0 : index
    %0 = vector.load %arg1[%c0, %c0_0] : memref<2x108xbf16, #tpu.memory_space<vmem>>, vector<2x108xbf16>
    %c0_1 = arith.constant 0 : index
    %c0_2 = arith.constant 0 : index
    %1 = vector.load %arg2[%c0_1, %c0_2] : memref<2x1xf32, #tpu.memory_space<vmem>>, vector<2x1xf32>
    %c0_3 = arith.constant 0 : index
    %c0_4 = arith.constant 0 : index
    %c0_5 = arith.constant 0 : index
    %2 = vector.load %arg0[%c0_3, %c0_4, %c0_5] : memref<2x108x27xbf16, #tpu.memory_space<vmem>>, vector<1x108x27xbf16>
    %3 = vector.shape_cast %2 : vector<1x108x27xbf16> to vector<108x27xbf16>
    %cst = arith.constant dense<0.000000e+00> : vector<2x27xf32>
    %4 = tpu.matmul %0, %3, %cst {dimension_numbers = #tpu.dot_dimension_numbers<[1], [0], [0], [1], [0, 0, 1, 1], [], []>} : vector<2x108xbf16>, vector<108x27xbf16>, vector<2x27xf32> -> vector<2x27xf32>
    %5 = vector.broadcast %1 : vector<2x1xf32> to vector<2x27xf32>
    %6 = arith.addf %4, %5 : vector<2x27xf32>
    %c0_6 = arith.constant 0 : index
    %c0_7 = arith.constant 0 : index
    %c0_8 = arith.constant 0 : index
    %7 = vector.load %arg3[%c0_6, %c0_7, %c0_8] : memref<2x2x27xf32, #tpu.memory_space<vmem>>, vector<1x2x27xf32>
    %8 = vector.shape_cast %7 : vector<1x2x27xf32> to vector<2x27xf32>
    %9 = vector.shape_cast %6 : vector<2x27xf32> to vector<1x2x27xf32>
    tpu.vector_store %arg3[%c0_6, %c0_7, %c0_8], %9 {strides = array<i32>} : memref<2x2x27xf32, #tpu.memory_space<vmem>>, vector<1x2x27xf32>,
    %c1 = arith.constant 1 : index
    %c0_9 = arith.constant 0 : index
    %c0_10 = arith.constant 0 : index
    %10 = vector.load %arg0[%c1, %c0_9, %c0_10] : memref<2x108x27xbf16, #tpu.memory_space<vmem>>, vector<1x108x27xbf16>
    %11 = vector.shape_cast %10 : vector<1x108x27xbf16> to vector<108x27xbf16>
    %cst_11 = arith.constant dense<0.000000e+00> : vector<2x27xf32>
    %12 = tpu.matmul %0, %11, %cst_11 {dimension_numbers = #tpu.dot_dimension_numbers<[1], [0], [0], [1], [0, 0, 1, 1], [], []>} : vector<2x108xbf16>, vector<108x27xbf16>, vector<2x27xf32> -> vector<2x27xf32>
    %13 = vector.broadcast %1 : vector<2x1xf32> to vector<2x27xf32>
    %14 = arith.addf %12, %13 : vector<2x27xf32>
    %c1_12 = arith.constant 1 : index
    %c0_13 = arith.constant 0 : index
    %c0_14 = arith.constant 0 : index
    %15 = vector.load %arg3[%c1_12, %c0_13, %c0_14] : memref<2x2x27xf32, #tpu.memory_space<vmem>>, vector<1x2x27xf32>
    %16 = vector.shape_cast %15 : vector<1x2x27xf32> to vector<2x27xf32>
    %17 = vector.shape_cast %14 : vector<2x27xf32> to vector<1x2x27xf32>
    tpu.vector_store %arg3[%c1_12, %c0_13, %c0_14], %17 {strides = array<i32>} : memref<2x2x27xf32, #tpu.memory_space<vmem>>, vector<1x2x27xf32>,
    return
  }
}

</mosaic_0001>

<llo_original>
// kernel: unet_forward_pallas.7
$region0: #{unet_forward_pallas.7}
  #allocation0 [shape = 'u32[]', space=smem, size = 0x4, offset = 0x4, fixed_abs, tag = 'smem constant byte address 0x4 - core index']
  #allocation1 [shape = 'u32[144,128]{1,0:T(1,128)}', space=vmem, size = 0x12000, scoped, tag = 'internal scratch']
  %s0 = inlined_call_operand.vmem [shape: bf16[2,54,1000], index: 0, kind: input, shape index: {}]
  %s1 = inlined_call_operand.vmem [shape: bf16[4,54], index: 1, kind: input, shape index: {}]
  %s2 = inlined_call_operand.vmem [shape: f32[4,1], index: 2, kind: input, shape index: {}]
  %s3 = inlined_call_operand.vmem [shape: bf16[2,4,1000], index: 3, kind: output, shape index: {}]
  %s4 = sld [smem:[#allocation0]]
  $region22: #{unet_forward_pallas.7} parent=0
    _
  %s6 = ssub.s32 1, %s4
  %s7 = scalar_select 0, %s6, %s4
  // Predicated region
  $region2: #{unet_forward_pallas.7} parent=0 // pred_check
    _
  $region3: #{unet_forward_pallas.7} parent=0 // pred_check_branch
    %9 = sbr.rel (0) target = $region5
  $region4: #{unet_forward_pallas.7} parent=0 // pred_region
    _
  $region5: #{unet_forward_pallas.7} parent=0 // pred_fallthru
    _
  // Predicated region
  $region6: #{unet_forward_pallas.7} parent=0 // pred_check
    _
  $region7: #{unet_forward_pallas.7} parent=0 // pred_check_branch
    %11 = sbr.rel (0) target = $region9
  $region8: #{unet_forward_pallas.7} parent=0 // pred_region
    _
  $region9: #{unet_forward_pallas.7} parent=0 // pred_fallthru
    _
  // Predicated region
  $region10: #{unet_forward_pallas.7} parent=0 // pred_check
    _
  $region11: #{unet_forward_pallas.7} parent=0 // pred_check_branch
    %13 = sbr.rel (0) target = $region13
  $region12: #{unet_forward_pallas.7} parent=0 // pred_region
    _
  $region13: #{unet_forward_pallas.7} parent=0 // pred_fallthru
    _
  %v15 = vld [vmem:[%s1] sm:$0x3]
  %v16 = vld [vmem:[%s2] sm:$0xf]
  %v17 = vld [vmem:[%s0] sm:$0xff]
  %v18 = vld [vmem:[%s0 + $0x8] sm:$0xff]
  %v19 = vld [vmem:[%s0 + $0x10] sm:$0xff]
  %v20 = vld [vmem:[%s0 + $0x18] sm:$0xff]
  %v21 = vld [vmem:[%s0 + $0x20] sm:$0xff]
  %v22 = vld [vmem:[%s0 + $0x28] sm:$0xff]
  %v23 = vld [vmem:[%s0 + $0x30] sm:$0xff]
  %v24 = vld [vmem:[%s0 + $0x38] sm:$0xff]
  %v25 = vld [vmem:[%s0 + $0x40] sm:$0xff]
  %v26 = vld [vmem:[%s0 + $0x48] sm:$0xff]
  %v27 = vld [vmem:[%s0 + $0x50] sm:$0xff]
  %v28 = vld [vmem:[%s0 + $0x58] sm:$0xff]
  %v29 = vld [vmem:[%s0 + $0x60] sm:$0xff]
  %v30 = vld [vmem:[%s0 + $0x68] sm:$0xff]
  %v31 = vld [vmem:[%s0 + $0x70] sm:$0xff]
  %v32 = vld [vmem:[%s0 + $0x78] sm:$0xff]
  %v33 = vld [vmem:[%s0 + $0x80] sm:$0xff]
  %v34 = vld [vmem:[%s0 + $0x88] sm:$0xff]
  %v35 = vld [vmem:[%s0 + $0x90] sm:$0xff]
  %v36 = vld [vmem:[%s0 + $0x98] sm:$0xff]
  %v37 = vld [vmem:[%s0 + $0xa0] sm:$0xff]
  %v38 = vld [vmem:[%s0 + $0xa8] sm:$0xff]
  %v39 = vld [vmem:[%s0 + $0xb0] sm:$0xff]
  %v40 = vld [vmem:[%s0 + $0xb8] sm:$0xff]
  %v41 = vld [vmem:[%s0 + $0xc0] sm:$0x77]
  %v42 = vld [vmem:[%s0 + $0xc8] sm:$0x77]
  %v43 = vld [vmem:[%s0 + $0xd0] sm:$0x77]
  %v44 = vld [vmem:[%s0 + $0xd8] sm:$0x77]
  %46 = vset.pattern.permute.xlu0 0
  %47 = vperm.xlu0 %46, %v16
  %v48 = vpop.permute.xlu0 %47
  %v78 = vunpack.c.l.b16 %v17
  %v79 = vunpack.c.h.b16 %v17
  %v80 = vunpack.c.l.b16 %v18
  %v81 = vunpack.c.h.b16 %v18
  %v82 = vunpack.c.l.b16 %v19
  %v83 = vunpack.c.h.b16 %v19
  %v84 = vunpack.c.l.b16 %v20
  %v85 = vunpack.c.h.b16 %v20
  %v86 = vunpack.c.l.b16 %v21
  %v87 = vunpack.c.h.b16 %v21
  %v88 = vunpack.c.l.b16 %v22
  %v89 = vunpack.c.h.b16 %v22
  %v90 = vunpack.c.l.b16 %v23
  %v91 = vunpack.c.h.b16 %v23
  %v92 = vunpack.c.l.b16 %v24
  %v93 = vunpack.c.h.b16 %v24
  %v94 = vunpack.c.l.b16 %v25
  %v95 = vunpack.c.h.b16 %v25
  %v96 = vunpack.c.l.b16 %v26
  %v97 = vunpack.c.h.b16 %v26
  %v98 = vunpack.c.l.b16 %v27
  %v99 = vunpack.c.h.b16 %v27
  %v100 = vunpack.c.l.b16 %v28
  %v101 = vunpack.c.h.b16 %v28
  %v102 = vunpack.c.l.b16 %v29
  %v103 = vunpack.c.h.b16 %v29
  %v104 = vunpack.c.l.b16 %v30
  %v105 = vunpack.c.h.b16 %v30
  %v106 = vunpack.c.l.b16 %v31
  %v107 = vunpack.c.h.b16 %v31
  %v108 = vunpack.c.l.b16 %v32
  %v109 = vunpack.c.h.b16 %v32
  %v110 = vunpack.c.l.b16 %v33
  %v111 = vunpack.c.h.b16 %v33
  %v112 = vunpack.c.l.b16 %v34
  %v113 = vunpack.c.h.b16 %v34
  %v114 = vunpack.c.l.b16 %v35
  %v115 = vunpack.c.h.b16 %v35
  %v116 = vunpack.c.l.b16 %v36
  %v117 = vunpack.c.h.b16 %v36
  %v118 = vunpack.c.l.b16 %v37
  %v119 = vunpack.c.h.b16 %v37
  %v120 = vunpack.c.l.b16 %v38
  %v121 = vunpack.c.h.b16 %v38
  %v122 = vunpack.c.l.b16 %v39
  %v123 = vunpack.c.h.b16 %v39
  %v124 = vunpack.c.l.b16 %v40
  %v125 = vunpack.c.h.b16 %v40
  %v126 = vunpack.c.l.b16 %v41
  %v127 = vunpack.c.h.b16 %v41
  %v128 = vunpack.c.l.b16 %v42
  %v129 = vunpack.c.h.b16 %v42
  %v130 = vunpack.c.l.b16 %v43
  %v131 = vunpack.c.h.b16 %v43
  %v132 = vunpack.c.l.b16 %v44
  %v133 = vunpack.c.h.b16 %v44
  %v134 = vpack.c.b16 %v86, %v78
  %v135 = vpack.c.b16 %v87, %v79
  %v136 = vpack.c.b16 %v88, %v80
  %v137 = vpack.c.b16 %v89, %v81
  %v138 = vpack.c.b16 %v90, %v82
  %v139 = vpack.c.b16 %v91, %v83
  %v140 = vpack.c.b16 %v92, %v84
  %v141 = vpack.c.b16 %v93, %v85
  %v142 = vpack.c.b16 %v102, %v94
  %v143 = vpack.c.b16 %v103, %v95
  %v144 = vpack.c.b16 %v104, %v96
  %v145 = vpack.c.b16 %v105, %v97
  %v146 = vpack.c.b16 %v106, %v98
  %v147 = vpack.c.b16 %v107, %v99
  %v148 = vpack.c.b16 %v108, %v100
  %v149 = vpack.c.b16 %v109, %v101
  %v150 = vpack.c.b16 %v118, %v110
  %v151 = vpack.c.b16 %v119, %v111
  %v152 = vpack.c.b16 %v120, %v112
  %v153 = vpack.c.b16 %v121, %v113
  %v154 = vpack.c.b16 %v122, %v114
  %v155 = vpack.c.b16 %v123, %v115
  %v156 = vpack.c.b16 %v124, %v116
  %v157 = vpack.c.b16 %v125, %v117
  %v158 = vpack.c.b16 %v126, %v126
  %v159 = vpack.c.b16 %v127, %v127
  %v160 = vpack.c.b16 %v128, %v128
  %v161 = vpack.c.b16 %v129, %v129
  %v162 = vpack.c.b16 %v130, %v130
  %v163 = vpack.c.b16 %v131, %v131
  %v164 = vpack.c.b16 %v132, %v132
  %v165 = vpack.c.b16 %v133, %v133
  %vm190 = vcmask 441344
  %v192 = vsel %vm190, %v15, 0
  %vm194 = vcmask 1042432
  %v196 = vsel %vm194, %v158, 0
  %v199 = vsel %vm194, %v159, 0
  %v202 = vsel %vm194, %v160, 0
  %v205 = vsel %vm194, %v161, 0
  %v208 = vsel %vm194, %v162, 0
  %v211 = vsel %vm194, %v163, 0
  %v214 = vsel %vm194, %v164, 0
  %v217 = vsel %vm194, %v165, 0
  %219 = vmatprep.subr.bf16.mxu0 %v135
  %220 = vmatpush1.bf16.msra.mxu0 %v134
  %221 = vmatprep.subr.bf16.mxu0 %v143
  %222 = vmatpush1.bf16.msra.mxu0 %v142
  %223 = vmatprep.subr.bf16.mxu0 %v151
  %224 = vmatpush1.bf16.msra.mxu0 %v150
  %225 = vmatprep.subr.bf16.mxu0 %v199
  %226 = vmatpush1.bf16.msra.mxu0 %v196
  %227 = vmatprep.subr.bf16.mxu0 0
  %228 = vmatpush1.bf16.msra.mxu0 0
  %229 = vmatprep.subr.bf16.mxu0 0
  %230 = vmatpush1.bf16.msra.mxu0 0
  %231 = vmatprep.subr.bf16.mxu0 0
  %232 = vmatpush1.bf16.msra.mxu0 0
  %233 = vmatprep.subr.bf16.mxu0 0
  %234 = vmatpush1.bf16.msra.mxu0 0
  %235 = vmatprep.subr.bf16.mxu0 0
  %236 = vmatpush1.bf16.msra.mxu0 0
  %237 = vmatprep.subr.bf16.mxu0 0
  %238 = vmatpush1.bf16.msra.mxu0 0
  %239 = vmatprep.subr.bf16.mxu0 0
  %240 = vmatpush1.bf16.msra.mxu0 0
  %241 = vmatprep.subr.bf16.mxu0 0
  %242 = vmatpush1.bf16.msra.mxu0 0
  %243 = vmatprep.subr.bf16.mxu0 0
  %244 = vmatpush1.bf16.msra.mxu0 0
  %245 = vmatprep.subr.bf16.mxu0 0
  %246 = vmatpush1.bf16.msra.mxu0 0
  %247 = vmatprep.subr.bf16.mxu0 0
  %248 = vmatpush1.bf16.msra.mxu0 0
  %249 = vmatprep.subr.bf16.mxu0 0
  %250 = vmatpush1.bf16.msra.mxu0 0
  %251 = vmatprep.mubr.bf16.mxu0 0
  %252 = vmatmul.mubr.bf16.gmra.mrb[0].mxu0 %v192
  %v253 = vpop.f32.mrb[0].mxu0
  %v254 = vadd.f32 %v48, %v253
  %v255 = vpop.f32.mrb[0].mxu0
  %v256 = vadd.f32 %v48, %v255
  %v257 = vpop.f32.mrb[0].mxu0
  %v258 = vpop.f32.mrb[0].mxu0
  %259 = vdwg.mxu0
  %260 = vmatprep.subr.bf16.mxu0 %v137
  %261 = vmatpush1.bf16.msra.mxu0 %v136
  %262 = vmatprep.subr.bf16.mxu0 %v145
  %263 = vmatpush1.bf16.msra.mxu0 %v144
  %264 = vmatprep.subr.bf16.mxu0 %v153
  %265 = vmatpush1.bf16.msra.mxu0 %v152
  %266 = vmatprep.subr.bf16.mxu0 %v205
  %267 = vmatpush1.bf16.msra.mxu0 %v202
  %268 = vmatprep.subr.bf16.mxu0 0
  %269 = vmatpush1.bf16.msra.mxu0 0
  %270 = vmatprep.subr.bf16.mxu0 0
  %271 = vmatpush1.bf16.msra.mxu0 0
  %272 = vmatprep.subr.bf16.mxu0 0
  %273 = vmatpush1.bf16.msra.mxu0 0
  %274 = vmatprep.subr.bf16.mxu0 0
  %275 = vmatpush1.bf16.msra.mxu0 0
  %276 = vmatprep.subr.bf16.mxu0 0
  %277 = vmatpush1.bf16.msra.mxu0 0
  %278 = vmatprep.subr.bf16.mxu0 0
  %279 = vmatpush1.bf16.msra.mxu0 0
  %280 = vmatprep.subr.bf16.mxu0 0
  %281 = vmatpush1.bf16.msra.mxu0 0
  %282 = vmatprep.subr.bf16.mxu0 0
  %283 = vmatpush1.bf16.msra.mxu0 0
  %284 = vmatprep.subr.bf16.mxu0 0
  %285 = vmatpush1.bf16.msra.mxu0 0
  %286 = vmatprep.subr.bf16.mxu0 0
  %287 = vmatpush1.bf16.msra.mxu0 0
  %288 = vmatprep.subr.bf16.mxu0 0
  %289 = vmatpush1.bf16.msra.mxu0 0
  %290 = vmatprep.subr.bf16.mxu0 0
  %291 = vmatpush1.bf16.msra.mxu0 0
  %292 = vmatprep.mubr.bf16.mxu0 0
  %293 = vmatmul.mubr.bf16.gmra.mrb[0].mxu0 %v192
  %v294 = vpop.f32.mrb[0].mxu0
  %v295 = vadd.f32 %v48, %v294
  %v296 = vpop.f32.mrb[0].mxu0
  %v297 = vadd.f32 %v48, %v296
  %v298 = vpop.f32.mrb[0].mxu0
  %v299 = vpop.f32.mrb[0].mxu0
  %300 = vdwg.mxu0
  %301 = vmatprep.subr.bf16.mxu0 %v139
  %302 = vmatpush1.bf16.msra.mxu0 %v138
  %303 = vmatprep.subr.bf16.mxu0 %v147
  %304 = vmatpush1.bf16.msra.mxu0 %v146
  %305 = vmatprep.subr.bf16.mxu0 %v155
  %306 = vmatpush1.bf16.msra.mxu0 %v154
  %307 = vmatprep.subr.bf16.mxu0 %v211
  %308 = vmatpush1.bf16.msra.mxu0 %v208
  %309 = vmatprep.subr.bf16.mxu0 0
  %310 = vmatpush1.bf16.msra.mxu0 0
  %311 = vmatprep.subr.bf16.mxu0 0
  %312 = vmatpush1.bf16.msra.mxu0 0
  %313 = vmatprep.subr.bf16.mxu0 0
  %314 = vmatpush1.bf16.msra.mxu0 0
  %315 = vmatprep.subr.bf16.mxu0 0
  %316 = vmatpush1.bf16.msra.mxu0 0
  %317 = vmatprep.subr.bf16.mxu0 0
  %318 = vmatpush1.bf16.msra.mxu0 0
  %319 = vmatprep.subr.bf16.mxu0 0
  %320 = vmatpush1.bf16.msra.mxu0 0
  %321 = vmatprep.subr.bf16.mxu0 0
  %322 = vmatpush1.bf16.msra.mxu0 0
  %323 = vmatprep.subr.bf16.mxu0 0
  %324 = vmatpush1.bf16.msra.mxu0 0
  %325 = vmatprep.subr.bf16.mxu0 0
  %326 = vmatpush1.bf16.msra.mxu0 0
  %327 = vmatprep.subr.bf16.mxu0 0
  %328 = vmatpush1.bf16.msra.mxu0 0
  %329 = vmatprep.subr.bf16.mxu0 0
  %330 = vmatpush1.bf16.msra.mxu0 0
  %331 = vmatprep.subr.bf16.mxu0 0
  %332 = vmatpush1.bf16.msra.mxu0 0
  %333 = vmatprep.mubr.bf16.mxu0 0
  %334 = vmatmul.mubr.bf16.gmra.mrb[0].mxu0 %v192
  %v335 = vpop.f32.mrb[0].mxu0
  %v336 = vadd.f32 %v48, %v335
  %v337 = vpop.f32.mrb[0].mxu0
  %v338 = vadd.f32 %v48, %v337
  %v339 = vpop.f32.mrb[0].mxu0
  %v340 = vpop.f32.mrb[0].mxu0
  %341 = vdwg.mxu0
  %342 = vmatprep.subr.bf16.mxu0 %v141
  %343 = vmatpush1.bf16.msra.mxu0 %v140
  %344 = vmatprep.subr.bf16.mxu0 %v149
  %345 = vmatpush1.bf16.msra.mxu0 %v148
  %346 = vmatprep.subr.bf16.mxu0 %v157
  %347 = vmatpush1.bf16.msra.mxu0 %v156
  %348 = vmatprep.subr.bf16.mxu0 %v217
  %349 = vmatpush1.bf16.msra.mxu0 %v214
  %350 = vmatprep.subr.bf16.mxu0 0
  %351 = vmatpush1.bf16.msra.mxu0 0
  %352 = vmatprep.subr.bf16.mxu0 0
  %353 = vmatpush1.bf16.msra.mxu0 0
  %354 = vmatprep.subr.bf16.mxu0 0
  %355 = vmatpush1.bf16.msra.mxu0 0
  %356 = vmatprep.subr.bf16.mxu0 0
  %357 = vmatpush1.bf16.msra.mxu0 0
  %358 = vmatprep.subr.bf16.mxu0 0
  %359 = vmatpush1.bf16.msra.mxu0 0
  %360 = vmatprep.subr.bf16.mxu0 0
  %361 = vmatpush1.bf16.msra.mxu0 0
  %362 = vmatprep.subr.bf16.mxu0 0
  %363 = vmatpush1.bf16.msra.mxu0 0
  %364 = vmatprep.subr.bf16.mxu0 0
  %365 = vmatpush1.bf16.msra.mxu0 0
  %366 = vmatprep.subr.bf16.mxu0 0
  %367 = vmatpush1.bf16.msra.mxu0 0
  %368 = vmatprep.subr.bf16.mxu0 0
  %369 = vmatpush1.bf16.msra.mxu0 0
  %370 = vmatprep.subr.bf16.mxu0 0
  %371 = vmatpush1.bf16.msra.mxu0 0
  %372 = vmatprep.subr.bf16.mxu0 0
  %373 = vmatpush1.bf16.msra.mxu0 0
  %374 = vmatprep.mubr.bf16.mxu0 0
  %375 = vmatmul.mubr.bf16.gmra.mrb[0].mxu0 %v192
  %v376 = vpop.f32.mrb[0].mxu0
  %v377 = vadd.f32 %v48, %v376
  %v378 = vpop.f32.mrb[0].mxu0
  %v379 = vadd.f32 %v48, %v378
  %v380 = vpop.f32.mrb[0].mxu0
  %v381 = vpop.f32.mrb[0].mxu0
  %382 = vdwg.mxu0
  %v383 = vmax.f32 %v254, 0.0
  %v384 = vmax.f32 %v256, 0.0
  %v385 = vmax.f32 %v295, 0.0
  %v386 = vmax.f32 %v297, 0.0
  %v387 = vmax.f32 %v336, 0.0
  %v388 = vmax.f32 %v338, 0.0
  %v389 = vmax.f32 %v377, 0.0
  %v390 = vmax.f32 %v379, 0.0
  %v391 = vpack.c.bf16 %v383, %v383
  %v392 = vpack.c.bf16 %v384, %v384
  %v393 = vpack.c.bf16 %v385, %v385
  %v394 = vpack.c.bf16 %v386, %v386
  %v395 = vpack.c.bf16 %v387, %v387
  %v396 = vpack.c.bf16 %v388, %v388
  %v397 = vpack.c.bf16 %v389, %v389
  %v398 = vpack.c.bf16 %v390, %v390
  %v407 = vcombine.low %v391, %v392
  %v408 = vcombine.low %v393, %v394
  %v410 = vunpack.c.l.s4 1983009808
  %v411 = vunpack.c.0.s8 %v410
  %v412 = vlaneseq
  %v413 = vshrl.u32 %v412, 7
  %v414 = vsub.s32 %v411, %v413
  %v415 = vrot.slane %v407, %v414
  %v417 = vunpack.c.l.s4 1983009808
  %v418 = vunpack.c.0.s8 %v417
  %v419 = vlaneseq
  %v420 = vshrl.u32 %v419, 7
  %v421 = vsub.s32 %v418, %v420
  %v422 = vrot.slane %v408, %v421
  %v423 = vcombine.low %v415, %v422
  %v424 = vcombine.low %v395, %v396
  %v425 = vcombine.low %v397, %v398
  %v427 = vunpack.c.l.s4 1983009808
  %v428 = vunpack.c.0.s8 %v427
  %v429 = vlaneseq
  %v430 = vshrl.u32 %v429, 7
  %v431 = vsub.s32 %v428, %v430
  %v432 = vrot.slane %v424, %v431
  %v434 = vunpack.c.l.s4 1983009808
  %v435 = vunpack.c.0.s8 %v434
  %v436 = vlaneseq
  %v437 = vshrl.u32 %v436, 7
  %v438 = vsub.s32 %v435, %v437
  %v439 = vrot.slane %v425, %v438
  %v440 = vcombine.low %v432, %v439
  %443 = vst [vmem:[%s3] sm:$0xff] %v423
  %vm444 = vcmask 1041408
  %vm445 = vcmask 1043458
  %vm446 = vmor %vm445, %vm444
  %vm447 = vcmask 1045508
  %vm448 = vmor %vm447, %vm446
  %vm449 = vcmask 850950
  %vm450 = vmor %vm449, %vm448
  %451 = vst.msk [vmem:[%s3 + $0x8] sm:$0xff] %vm450, %v440
  %s452 = scalar_lea.vmem %s0, 224
  %v453 = vld [vmem:[%s452] sm:$0xff]
  %v454 = vld [vmem:[%s452 + $0x8] sm:$0xff]
  %v455 = vld [vmem:[%s452 + $0x10] sm:$0xff]
  %v456 = vld [vmem:[%s452 + $0x18] sm:$0xff]
  %v457 = vld [vmem:[%s452 + $0x20] sm:$0xff]
  %v458 = vld [vmem:[%s452 + $0x28] sm:$0xff]
  %v459 = vld [vmem:[%s452 + $0x30] sm:$0xff]
  %v460 = vld [vmem:[%s452 + $0x38] sm:$0xff]
  %v461 = vld [vmem:[%s452 + $0x40] sm:$0xff]
  %v462 = vld [vmem:[%s452 + $0x48] sm:$0xff]
  %v463 = vld [vmem:[%s452 + $0x50] sm:$0xff]
  %v464 = vld [vmem:[%s452 + $0x58] sm:$0xff]
  %v465 = vld [vmem:[%s452 + $0x60] sm:$0xff]
  %v466 = vld [vmem:[%s452 + $0x68] sm:$0xff]
  %v467 = vld [vmem:[%s452 + $0x70] sm:$0xff]
  %v468 = vld [vmem:[%s452 + $0x78] sm:$0xff]
  %v469 = vld [vmem:[%s452 + $0x80] sm:$0xff]
  %v470 = vld [vmem:[%s452 + $0x88] sm:$0xff]
  %v471 = vld [vmem:[%s452 + $0x90] sm:$0xff]
  %v472 = vld [vmem:[%s452 + $0x98] sm:$0xff]
  %v473 = vld [vmem:[%s452 + $0xa0] sm:$0xff]
  %v474 = vld [vmem:[%s452 + $0xa8] sm:$0xff]
  %v475 = vld [vmem:[%s452 + $0xb0] sm:$0xff]
  %v476 = vld [vmem:[%s452 + $0xb8] sm:$0xff]
  %v477 = vld [vmem:[%s452 + $0xc0] sm:$0x77]
  %v478 = vld [vmem:[%s452 + $0xc8] sm:$0x77]
  %v479 = vld [vmem:[%s452 + $0xd0] sm:$0x77]
  %v480 = vld [vmem:[%s452 + $0xd8] sm:$0x77]
  %v509 = vunpack.c.l.b16 %v453
  %v510 = vunpack.c.h.b16 %v453
  %v511 = vunpack.c.l.b16 %v454
  %v512 = vunpack.c.h.b16 %v454
  %v513 = vunpack.c.l.b16 %v455
  %v514 = vunpack.c.h.b16 %v455
  %v515 = vunpack.c.l.b16 %v456
  %v516 = vunpack.c.h.b16 %v456
  %v517 = vunpack.c.l.b16 %v457
  %v518 = vunpack.c.h.b16 %v457
  %v519 = vunpack.c.l.b16 %v458
  %v520 = vunpack.c.h.b16 %v458
  %v521 = vunpack.c.l.b16 %v459
  %v522 = vunpack.c.h.b16 %v459
  %v523 = vunpack.c.l.b16 %v460
  %v524 = vunpack.c.h.b16 %v460
  %v525 = vunpack.c.l.b16 %v461
  %v526 = vunpack.c.h.b16 %v461
  %v527 = vunpack.c.l.b16 %v462
  %v528 = vunpack.c.h.b16 %v462
  %v529 = vunpack.c.l.b16 %v463
  %v530 = vunpack.c.h.b16 %v463
  %v531 = vunpack.c.l.b16 %v464
  %v532 = vunpack.c.h.b16 %v464
  %v533 = vunpack.c.l.b16 %v465
  %v534 = vunpack.c.h.b16 %v465
  %v535 = vunpack.c.l.b16 %v466
  %v536 = vunpack.c.h.b16 %v466
  %v537 = vunpack.c.l.b16 %v467
  %v538 = vunpack.c.h.b16 %v467
  %v539 = vunpack.c.l.b16 %v468
  %v540 = vunpack.c.h.b16 %v468
  %v541 = vunpack.c.l.b16 %v469
  %v542 = vunpack.c.h.b16 %v469
  %v543 = vunpack.c.l.b16 %v470
  %v544 = vunpack.c.h.b16 %v470
  %v545 = vunpack.c.l.b16 %v471
  %v546 = vunpack.c.h.b16 %v471
  %v547 = vunpack.c.l.b16 %v472
  %v548 = vunpack.c.h.b16 %v472
  %v549 = vunpack.c.l.b16 %v473
  %v550 = vunpack.c.h.b16 %v473
  %v551 = vunpack.c.l.b16 %v474
  %v552 = vunpack.c.h.b16 %v474
  %v553 = vunpack.c.l.b16 %v475
  %v554 = vunpack.c.h.b16 %v475
  %v555 = vunpack.c.l.b16 %v476
  %v556 = vunpack.c.h.b16 %v476
  %v557 = vunpack.c.l.b16 %v477
  %v558 = vunpack.c.h.b16 %v477
  %v559 = vunpack.c.l.b16 %v478
  %v560 = vunpack.c.h.b16 %v478
  %v561 = vunpack.c.l.b16 %v479
  %v562 = vunpack.c.h.b16 %v479
  %v563 = vunpack.c.l.b16 %v480
  %v564 = vunpack.c.h.b16 %v480
  %v565 = vpack.c.b16 %v517, %v509
  %v566 = vpack.c.b16 %v518, %v510
  %v567 = vpack.c.b16 %v519, %v511
  %v568 = vpack.c.b16 %v520, %v512
  %v569 = vpack.c.b16 %v521, %v513
  %v570 = vpack.c.b16 %v522, %v514
  %v571 = vpack.c.b16 %v523, %v515
  %v572 = vpack.c.b16 %v524, %v516
  %v573 = vpack.c.b16 %v533, %v525
  %v574 = vpack.c.b16 %v534, %v526
  %v575 = vpack.c.b16 %v535, %v527
  %v576 = vpack.c.b16 %v536, %v528
  %v577 = vpack.c.b16 %v537, %v529
  %v578 = vpack.c.b16 %v538, %v530
  %v579 = vpack.c.b16 %v539, %v531
  %v580 = vpack.c.b16 %v540, %v532
  %v581 = vpack.c.b16 %v549, %v541
  %v582 = vpack.c.b16 %v550, %v542
  %v583 = vpack.c.b16 %v551, %v543
  %v584 = vpack.c.b16 %v552, %v544
  %v585 = vpack.c.b16 %v553, %v545
  %v586 = vpack.c.b16 %v554, %v546
  %v587 = vpack.c.b16 %v555, %v547
  %v588 = vpack.c.b16 %v556, %v548
  %v589 = vpack.c.b16 %v557, %v557
  %v590 = vpack.c.b16 %v558, %v558
  %v591 = vpack.c.b16 %v559, %v559
  %v592 = vpack.c.b16 %v560, %v560
  %v593 = vpack.c.b16 %v561, %v561
  %v594 = vpack.c.b16 %v562, %v562
  %v595 = vpack.c.b16 %v563, %v563
  %v596 = vpack.c.b16 %v564, %v564
  %v622 = vsel %vm194, %v589, 0
  %v625 = vsel %vm194, %v590, 0
  %v628 = vsel %vm194, %v591, 0
  %v631 = vsel %vm194, %v592, 0
  %v634 = vsel %vm194, %v593, 0
  %v637 = vsel %vm194, %v594, 0
  %v640 = vsel %vm194, %v595, 0
  %v643 = vsel %vm194, %v596, 0
  %645 = vmatprep.subr.bf16.mxu0 %v566
  %646 = vmatpush1.bf16.msra.mxu0 %v565
  %647 = vmatprep.subr.bf16.mxu0 %v574
  %648 = vmatpush1.bf16.msra.mxu0 %v573
  %649 = vmatprep.subr.bf16.mxu0 %v582
  %650 = vmatpush1.bf16.msra.mxu0 %v581
  %651 = vmatprep.subr.bf16.mxu0 %v625
  %652 = vmatpush1.bf16.msra.mxu0 %v622
  %653 = vmatprep.subr.bf16.mxu0 0
  %654 = vmatpush1.bf16.msra.mxu0 0
  %655 = vmatprep.subr.bf16.mxu0 0
  %656 = vmatpush1.bf16.msra.mxu0 0
  %657 = vmatprep.subr.bf16.mxu0 0
  %658 = vmatpush1.bf16.msra.mxu0 0
  %659 = vmatprep.subr.bf16.mxu0 0
  %660 = vmatpush1.bf16.msra.mxu0 0
  %661 = vmatprep.subr.bf16.mxu0 0
  %662 = vmatpush1.bf16.msra.mxu0 0
  %663 = vmatprep.subr.bf16.mxu0 0
  %664 = vmatpush1.bf16.msra.mxu0 0
  %665 = vmatprep.subr.bf16.mxu0 0
  %666 = vmatpush1.bf16.msra.mxu0 0
  %667 = vmatprep.subr.bf16.mxu0 0
  %668 = vmatpush1.bf16.msra.mxu0 0
  %669 = vmatprep.subr.bf16.mxu0 0
  %670 = vmatpush1.bf16.msra.mxu0 0
  %671 = vmatprep.subr.bf16.mxu0 0
  %672 = vmatpush1.bf16.msra.mxu0 0
  %673 = vmatprep.subr.bf16.mxu0 0
  %674 = vmatpush1.bf16.msra.mxu0 0
  %675 = vmatprep.subr.bf16.mxu0 0
  %676 = vmatpush1.bf16.msra.mxu0 0
  %677 = vmatprep.mubr.bf16.mxu0 0
  %678 = vmatmul.mubr.bf16.gmra.mrb[0].mxu0 %v192
  %v679 = vpop.f32.mrb[0].mxu0
  %v680 = vadd.f32 %v48, %v679
  %v681 = vpop.f32.mrb[0].mxu0
  %v682 = vadd.f32 %v48, %v681
  %v683 = vpop.f32.mrb[0].mxu0
  %v684 = vpop.f32.mrb[0].mxu0
  %685 = vdwg.mxu0
  %686 = vmatprep.subr.bf16.mxu0 %v568
  %687 = vmatpush1.bf16.msra.mxu0 %v567
  %688 = vmatprep.subr.bf16.mxu0 %v576
  %689 = vmatpush1.bf16.msra.mxu0 %v575
  %690 = vmatprep.subr.bf16.mxu0 %v584
  %691 = vmatpush1.bf16.msra.mxu0 %v583
  %692 = vmatprep.subr.bf16.mxu0 %v631
  %693 = vmatpush1.bf16.msra.mxu0 %v628
  %694 = vmatprep.subr.bf16.mxu0 0
  %695 = vmatpush1.bf16.msra.mxu0 0
  %696 = vmatprep.subr.bf16.mxu0 0
  %697 = vmatpush1.bf16.msra.mxu0 0
  %698 = vmatprep.subr.bf16.mxu0 0
  %699 = vmatpush1.bf16.msra.mxu0 0
  %700 = vmatprep.subr.bf16.mxu0 0
  %701 = vmatpush1.bf16.msra.mxu0 0
  %702 = vmatprep.subr.bf16.mxu0 0
  %703 = vmatpush1.bf16.msra.mxu0 0
  %704 = vmatprep.subr.bf16.mxu0 0
  %705 = vmatpush1.bf16.msra.mxu0 0
  %706 = vmatprep.subr.bf16.mxu0 0
  %707 = vmatpush1.bf16.msra.mxu0 0
  %708 = vmatprep.subr.bf16.mxu0 0
  %709 = vmatpush1.bf16.msra.mxu0 0
  %710 = vmatprep.subr.bf16.mxu0 0
  %711 = vmatpush1.bf16.msra.mxu0 0
  %712 = vmatprep.subr.bf16.mxu0 0
  %713 = vmatpush1.bf16.msra.mxu0 0
  %714 = vmatprep.subr.bf16.mxu0 0
  %715 = vmatpush1.bf16.msra.mxu0 0
  %716 = vmatprep.subr.bf16.mxu0 0
  %717 = vmatpush1.bf16.msra.mxu0 0
  %718 = vmatprep.mubr.bf16.mxu0 0
  %719 = vmatmul.mubr.bf16.gmra.mrb[0].mxu0 %v192
  %v720 = vpop.f32.mrb[0].mxu0
  %v721 = vadd.f32 %v48, %v720
  %v722 = vpop.f32.mrb[0].mxu0
  %v723 = vadd.f32 %v48, %v722
  %v724 = vpop.f32.mrb[0].mxu0
  %v725 = vpop.f32.mrb[0].mxu0
  %726 = vdwg.mxu0
  %727 = vmatprep.subr.bf16.mxu0 %v570
  %728 = vmatpush1.bf16.msra.mxu0 %v569
  %729 = vmatprep.subr.bf16.mxu0 %v578
  %730 = vmatpush1.bf16.msra.mxu0 %v577
  %731 = vmatprep.subr.bf16.mxu0 %v586
  %732 = vmatpush1.bf16.msra.mxu0 %v585
  %733 = vmatprep.subr.bf16.mxu0 %v637
  %734 = vmatpush1.bf16.msra.mxu0 %v634
  %735 = vmatprep.subr.bf16.mxu0 0
  %736 = vmatpush1.bf16.msra.mxu0 0
  %737 = vmatprep.subr.bf16.mxu0 0
  %738 = vmatpush1.bf16.msra.mxu0 0
  %739 = vmatprep.subr.bf16.mxu0 0
  %740 = vmatpush1.bf16.msra.mxu0 0
  %741 = vmatprep.subr.bf16.mxu0 0
  %742 = vmatpush1.bf16.msra.mxu0 0
  %743 = vmatprep.subr.bf16.mxu0 0
  %744 = vmatpush1.bf16.msra.mxu0 0
  %745 = vmatprep.subr.bf16.mxu0 0
  %746 = vmatpush1.bf16.msra.mxu0 0
  %747 = vmatprep.subr.bf16.mxu0 0
  %748 = vmatpush1.bf16.msra.mxu0 0
  %749 = vmatprep.subr.bf16.mxu0 0
  %750 = vmatpush1.bf16.msra.mxu0 0
  %751 = vmatprep.subr.bf16.mxu0 0
  %752 = vmatpush1.bf16.msra.mxu0 0
  %753 = vmatprep.subr.bf16.mxu0 0
  %754 = vmatpush1.bf16.msra.mxu0 0
  %755 = vmatprep.subr.bf16.mxu0 0
  %756 = vmatpush1.bf16.msra.mxu0 0
  %757 = vmatprep.subr.bf16.mxu0 0
  %758 = vmatpush1.bf16.msra.mxu0 0
  %759 = vmatprep.mubr.bf16.mxu0 0
  %760 = vmatmul.mubr.bf16.gmra.mrb[0].mxu0 %v192
  %v761 = vpop.f32.mrb[0].mxu0
  %v762 = vadd.f32 %v48, %v761
  %v763 = vpop.f32.mrb[0].mxu0
  %v764 = vadd.f32 %v48, %v763
  %v765 = vpop.f32.mrb[0].mxu0
  %v766 = vpop.f32.mrb[0].mxu0
  %767 = vdwg.mxu0
  %768 = vmatprep.subr.bf16.mxu0 %v572
  %769 = vmatpush1.bf16.msra.mxu0 %v571
  %770 = vmatprep.subr.bf16.mxu0 %v580
  %771 = vmatpush1.bf16.msra.mxu0 %v579
  %772 = vmatprep.subr.bf16.mxu0 %v588
  %773 = vmatpush1.bf16.msra.mxu0 %v587
  %774 = vmatprep.subr.bf16.mxu0 %v643
  %775 = vmatpush1.bf16.msra.mxu0 %v640
  %776 = vmatprep.subr.bf16.mxu0 0
  %777 = vmatpush1.bf16.msra.mxu0 0
  %778 = vmatprep.subr.bf16.mxu0 0
  %779 = vmatpush1.bf16.msra.mxu0 0
  %780 = vmatprep.subr.bf16.mxu0 0
  %781 = vmatpush1.bf16.msra.mxu0 0
  %782 = vmatprep.subr.bf16.mxu0 0
  %783 = vmatpush1.bf16.msra.mxu0 0
  %784 = vmatprep.subr.bf16.mxu0 0
  %785 = vmatpush1.bf16.msra.mxu0 0
  %786 = vmatprep.subr.bf16.mxu0 0
  %787 = vmatpush1.bf16.msra.mxu0 0
  %788 = vmatprep.subr.bf16.mxu0 0
  %789 = vmatpush1.bf16.msra.mxu0 0
  %790 = vmatprep.subr.bf16.mxu0 0
  %791 = vmatpush1.bf16.msra.mxu0 0
  %792 = vmatprep.subr.bf16.mxu0 0
  %793 = vmatpush1.bf16.msra.mxu0 0
  %794 = vmatprep.subr.bf16.mxu0 0
  %795 = vmatpush1.bf16.msra.mxu0 0
  %796 = vmatprep.subr.bf16.mxu0 0
  %797 = vmatpush1.bf16.msra.mxu0 0
  %798 = vmatprep.subr.bf16.mxu0 0
  %799 = vmatpush1.bf16.msra.mxu0 0
  %800 = vmatprep.mubr.bf16.mxu0 0
  %801 = vmatmul.mubr.bf16.gmra.mrb[0].mxu0 %v192
  %v802 = vpop.f32.mrb[0].mxu0
  %v803 = vadd.f32 %v48, %v802
  %v804 = vpop.f32.mrb[0].mxu0
  %v805 = vadd.f32 %v48, %v804
  %v806 = vpop.f32.mrb[0].mxu0
  %v807 = vpop.f32.mrb[0].mxu0
  %808 = vdwg.mxu0
  %v809 = vmax.f32 %v680, 0.0
  %v810 = vmax.f32 %v682, 0.0
  %v811 = vmax.f32 %v721, 0.0
  %v812 = vmax.f32 %v723, 0.0
  %v813 = vmax.f32 %v762, 0.0
  %v814 = vmax.f32 %v764, 0.0
  %v815 = vmax.f32 %v803, 0.0
  %v816 = vmax.f32 %v805, 0.0
  %v817 = vpack.c.bf16 %v809, %v809
  %v818 = vpack.c.bf16 %v810, %v810
  %v819 = vpack.c.bf16 %v811, %v811
  %v820 = vpack.c.bf16 %v812, %v812
  %v821 = vpack.c.bf16 %v813, %v813
  %v822 = vpack.c.bf16 %v814, %v814
  %v823 = vpack.c.bf16 %v815, %v815
  %v824 = vpack.c.bf16 %v816, %v816
  %v833 = vcombine.low %v817, %v818
  %v834 = vcombine.low %v819, %v820
  %v836 = vunpack.c.l.s4 1983009808
  %v837 = vunpack.c.0.s8 %v836
  %v838 = vlaneseq
  %v839 = vshrl.u32 %v838, 7
  %v840 = vsub.s32 %v837, %v839
  %v841 = vrot.slane %v833, %v840
  %v843 = vunpack.c.l.s4 1983009808
  %v844 = vunpack.c.0.s8 %v843
  %v845 = vlaneseq
  %v846 = vshrl.u32 %v845, 7
  %v847 = vsub.s32 %v844, %v846
  %v848 = vrot.slane %v834, %v847
  %v849 = vcombine.low %v841, %v848
  %v850 = vcombine.low %v821, %v822
  %v851 = vcombine.low %v823, %v824
  %v853 = vunpack.c.l.s4 1983009808
  %v854 = vunpack.c.0.s8 %v853
  %v855 = vlaneseq
  %v856 = vshrl.u32 %v855, 7
  %v857 = vsub.s32 %v854, %v856
  %v858 = vrot.slane %v850, %v857
  %v860 = vunpack.c.l.s4 1983009808
  %v861 = vunpack.c.0.s8 %v860
  %v862 = vlaneseq
  %v863 = vshrl.u32 %v862, 7
  %v864 = vsub.s32 %v861, %v863
  %v865 = vrot.slane %v851, %v864
  %v866 = vcombine.low %v858, %v865
  %s869 = scalar_lea.vmem %s3, 16
  %870 = vst [vmem:[%s869] sm:$0xff] %v849
  %871 = vst.msk [vmem:[%s869 + $0x8] sm:$0xff] %vm450, %v866
  // Predicated region
  $region14: #{unet_forward_pallas.7} parent=0 // pred_check
    _
  $region15: #{unet_forward_pallas.7} parent=0 // pred_check_branch
    %873 = sbr.rel (0) target = $region17
  $region16: #{unet_forward_pallas.7} parent=0 // pred_region
    _
  $region17: #{unet_forward_pallas.7} parent=0 // pred_fallthru
    _
  // Predicated region
  $region18: #{unet_forward_pallas.7} parent=0 // pred_check
    _
  $region19: #{unet_forward_pallas.7} parent=0 // pred_check_branch
    %875 = sbr.rel (0) target = $region21
  $region20: #{unet_forward_pallas.7} parent=0 // pred_region
    _
  $region21: #{unet_forward_pallas.7} parent=0 // pred_fallthru
    _

// kernel: unet_forward_pallas.8
$region0: #{unet_forward_pallas.8}
  #allocation0 [shape = 'u32[]', space=smem, size = 0x4, offset = 0x4, fixed_abs, tag = 'smem constant byte address 0x4 - core index']
  #allocation1 [shape = 'u32[144,128]{1,0:T(1,128)}', space=vmem, size = 0x12000, scoped, tag = 'internal scratch']
  %s0 = inlined_call_operand.vmem [shape: bf16[2,108,125], index: 0, kind: input, shape index: {}]
  %s1 = inlined_call_operand.vmem [shape: bf16[4,108], index: 1, kind: input, shape index: {}]
  %s2 = inlined_call_operand.vmem [shape: f32[4,1], index: 2, kind: input, shape index: {}]
  %s3 = inlined_call_operand.vmem [shape: bf16[2,4,125], index: 3, kind: output, shape index: {}]
  %s4 = sld [smem:[#allocation0]]
  $region22: #{unet_forward_pallas.8} parent=0
    _
  %s6 = ssub.s32 1, %s4
  %s7 = scalar_select 0, %s6, %s4
  // Predicated region
  $region2: #{unet_forward_pallas.8} parent=0 // pred_check
    _
  $region3: #{unet_forward_pallas.8} parent=0 // pred_check_branch
    %9 = sbr.rel (0) target = $region5
  $region4: #{unet_forward_pallas.8} parent=0 // pred_region
    _
  $region5: #{unet_forward_pallas.8} parent=0 // pred_fallthru
    _
  // Predicated region
  $region6: #{unet_forward_pallas.8} parent=0 // pred_check
    _
  $region7: #{unet_forward_pallas.8} parent=0 // pred_check_branch
    %11 = sbr.rel (0) target = $region9
  $region8: #{unet_forward_pallas.8} parent=0 // pred_region
    _
  $region9: #{unet_forward_pallas.8} parent=0 // pred_fallthru
    _
  // Predicated region
  $region10: #{unet_forward_pallas.8} parent=0 // pred_check
    _
  $region11: #{unet_forward_pallas.8} parent=0 // pred_check_branch
    %13 = sbr.rel (0) target = $region13
  $region12: #{unet_forward_pallas.8} parent=0 // pred_region
    _
  $region13: #{unet_forward_pallas.8} parent=0 // pred_fallthru
    _
  %v15 = vld [vmem:[%s1] sm:$0x3]
  %v16 = vld [vmem:[%s2] sm:$0xf]
  %v17 = vld [vmem:[%s0] sm:$0xf]
  %v18 = vld [vmem:[%s0 + $0x4] sm:$0xf]
  %v19 = vld [vmem:[%s0 + $0x8] sm:$0xf]
  %v20 = vld [vmem:[%s0 + $0xc] sm:$0xf]
  %v21 = vld [vmem:[%s0 + $0x10] sm:$0xf]
  %v22 = vld [vmem:[%s0 + $0x14] sm:$0xf]
  %v23 = vld [vmem:[%s0 + $0x18] sm:$0xf]
  %v24 = vld [vmem:[%s0 + $0x1c] sm:$0xf]
  %v25 = vld [vmem:[%s0 + $0x20] sm:$0xf]
  %v26 = vld [vmem:[%s0 + $0x24] sm:$0xf]
  %v27 = vld [vmem:[%s0 + $0x28] sm:$0xf]
  %v28 = vld [vmem:[%s0 + $0x2c] sm:$0xf]
  %v29 = vld [vmem:[%s0 + $0x30] sm:$0xf]
  %v30 = vld [vmem:[%s0 + $0x34] sm:$0x3]
  %32 = vset.pattern.permute.xlu0 0
  %33 = vperm.xlu0 %32, %v16
  %v34 = vpop.permute.xlu0 %33
  %v50 = vunpack.c.l.b16 %v17
  %v51 = vunpack.c.l.b16 %v18
  %v52 = vunpack.c.l.b16 %v19
  %v53 = vunpack.c.l.b16 %v20
  %v54 = vunpack.c.l.b16 %v21
  %v55 = vunpack.c.l.b16 %v22
  %v56 = vunpack.c.l.b16 %v23
  %v57 = vunpack.c.l.b16 %v24
  %v58 = vunpack.c.l.b16 %v25
  %v59 = vunpack.c.l.b16 %v26
  %v60 = vunpack.c.l.b16 %v27
  %v61 = vunpack.c.l.b16 %v28
  %v62 = vunpack.c.l.b16 %v29
  %v63 = vunpack.c.l.b16 %v30
  %v64 = vpack.c.b16 %v51, %v50
  %v65 = vpack.c.b16 %v53, %v52
  %v66 = vpack.c.b16 %v55, %v54
  %v67 = vpack.c.b16 %v57, %v56
  %v68 = vpack.c.b16 %v59, %v58
  %v69 = vpack.c.b16 %v61, %v60
  %v70 = vpack.c.b16 %v63, %v62
  %vm77 = vcmask 883712
  %v79 = vsel %vm77, %v15, 0
  %vm81 = vcmask 1045504
  %v83 = vsel %vm81, %v70, 0
  %85 = vmatprep.subr.bf16.mxu0 0
  %86 = vmatpush1.bf16.msra.mxu0 %v64
  %87 = vmatprep.subr.bf16.mxu0 0
  %88 = vmatpush1.bf16.msra.mxu0 %v65
  %89 = vmatprep.subr.bf16.mxu0 0
  %90 = vmatpush1.bf16.msra.mxu0 %v66
  %91 = vmatprep.subr.bf16.mxu0 0
  %92 = vmatpush1.bf16.msra.mxu0 %v67
  %93 = vmatprep.subr.bf16.mxu0 0
  %94 = vmatpush1.bf16.msra.mxu0 %v68
  %95 = vmatprep.subr.bf16.mxu0 0
  %96 = vmatpush1.bf16.msra.mxu0 %v69
  %97 = vmatprep.subr.bf16.mxu0 0
  %98 = vmatpush1.bf16.msra.mxu0 %v83
  %99 = vmatprep.subr.bf16.mxu0 0
  %100 = vmatpush1.bf16.msra.mxu0 0
  %101 = vmatprep.subr.bf16.mxu0 0
  %102 = vmatpush1.bf16.msra.mxu0 0
  %103 = vmatprep.subr.bf16.mxu0 0
  %104 = vmatpush1.bf16.msra.mxu0 0
  %105 = vmatprep.subr.bf16.mxu0 0
  %106 = vmatpush1.bf16.msra.mxu0 0
  %107 = vmatprep.subr.bf16.mxu0 0
  %108 = vmatpush1.bf16.msra.mxu0 0
  %109 = vmatprep.subr.bf16.mxu0 0
  %110 = vmatpush1.bf16.msra.mxu0 0
  %111 = vmatprep.subr.bf16.mxu0 0
  %112 = vmatpush1.bf16.msra.mxu0 0
  %113 = vmatprep.subr.bf16.mxu0 0
  %114 = vmatpush1.bf16.msra.mxu0 0
  %115 = vmatprep.subr.bf16.mxu0 0
  %116 = vmatpush1.bf16.msra.mxu0 0
  %117 = vmatprep.mubr.bf16.mxu0 0
  %118 = vmatmul.mubr.bf16.gmra.mrb[0].mxu0 %v79
  %v119 = vpop.f32.mrb[0].mxu0
  %v120 = vadd.f32 %v34, %v119
  %v121 = vpop.f32.mrb[0].mxu0
  %v122 = vpop.f32.mrb[0].mxu0
  %v123 = vpop.f32.mrb[0].mxu0
  %124 = vdwg.mxu0
  %v125 = vmax.f32 %v120, 0.0
  %v126 = vpack.c.bf16 %v125, %v125
  %vm127 = vcmask 1016832
  %128 = vst.msk [vmem:[%s3] sm:$0x3] %vm127, %v126
  %s129 = scalar_lea.vmem %s0, 56
  %v130 = vld [vmem:[%s129] sm:$0xf]
  %v131 = vld [vmem:[%s129 + $0x4] sm:$0xf]
  %v132 = vld [vmem:[%s129 + $0x8] sm:$0xf]
  %v133 = vld [vmem:[%s129 + $0xc] sm:$0xf]
  %v134 = vld [vmem:[%s129 + $0x10] sm:$0xf]
  %v135 = vld [vmem:[%s129 + $0x14] sm:$0xf]
  %v136 = vld [vmem:[%s129 + $0x18] sm:$0xf]
  %v137 = vld [vmem:[%s129 + $0x1c] sm:$0xf]
  %v138 = vld [vmem:[%s129 + $0x20] sm:$0xf]
  %v139 = vld [vmem:[%s129 + $0x24] sm:$0xf]
  %v140 = vld [vmem:[%s129 + $0x28] sm:$0xf]
  %v141 = vld [vmem:[%s129 + $0x2c] sm:$0xf]
  %v142 = vld [vmem:[%s129 + $0x30] sm:$0xf]
  %v143 = vld [vmem:[%s129 + $0x34] sm:$0x3]
  %v158 = vunpack.c.l.b16 %v130
  %v159 = vunpack.c.l.b16 %v131
  %v160 = vunpack.c.l.b16 %v132
  %v161 = vunpack.c.l.b16 %v133
  %v162 = vunpack.c.l.b16 %v134
  %v163 = vunpack.c.l.b16 %v135
  %v164 = vunpack.c.l.b16 %v136
  %v165 = vunpack.c.l.b16 %v137
  %v166 = vunpack.c.l.b16 %v138
  %v167 = vunpack.c.l.b16 %v139
  %v168 = vunpack.c.l.b16 %v140
  %v169 = vunpack.c.l.b16 %v141
  %v170 = vunpack.c.l.b16 %v142
  %v171 = vunpack.c.l.b16 %v143
  %v172 = vpack.c.b16 %v159, %v158
  %v173 = vpack.c.b16 %v161, %v160
  %v174 = vpack.c.b16 %v163, %v162
  %v175 = vpack.c.b16 %v165, %v164
  %v176 = vpack.c.b16 %v167, %v166
  %v177 = vpack.c.b16 %v169, %v168
  %v178 = vpack.c.b16 %v171, %v170
  %v186 = vsel %vm81, %v178, 0
  %188 = vmatprep.subr.bf16.mxu0 0
  %189 = vmatpush1.bf16.msra.mxu0 %v172
  %190 = vmatprep.subr.bf16.mxu0 0
  %191 = vmatpush1.bf16.msra.mxu0 %v173
  %192 = vmatprep.subr.bf16.mxu0 0
  %193 = vmatpush1.bf16.msra.mxu0 %v174
  %194 = vmatprep.subr.bf16.mxu0 0
  %195 = vmatpush1.bf16.msra.mxu0 %v175
  %196 = vmatprep.subr.bf16.mxu0 0
  %197 = vmatpush1.bf16.msra.mxu0 %v176
  %198 = vmatprep.subr.bf16.mxu0 0
  %199 = vmatpush1.bf16.msra.mxu0 %v177
  %200 = vmatprep.subr.bf16.mxu0 0
  %201 = vmatpush1.bf16.msra.mxu0 %v186
  %202 = vmatprep.subr.bf16.mxu0 0
  %203 = vmatpush1.bf16.msra.mxu0 0
  %204 = vmatprep.subr.bf16.mxu0 0
  %205 = vmatpush1.bf16.msra.mxu0 0
  %206 = vmatprep.subr.bf16.mxu0 0
  %207 = vmatpush1.bf16.msra.mxu0 0
  %208 = vmatprep.subr.bf16.mxu0 0
  %209 = vmatpush1.bf16.msra.mxu0 0
  %210 = vmatprep.subr.bf16.mxu0 0
  %211 = vmatpush1.bf16.msra.mxu0 0
  %212 = vmatprep.subr.bf16.mxu0 0
  %213 = vmatpush1.bf16.msra.mxu0 0
  %214 = vmatprep.subr.bf16.mxu0 0
  %215 = vmatpush1.bf16.msra.mxu0 0
  %216 = vmatprep.subr.bf16.mxu0 0
  %217 = vmatpush1.bf16.msra.mxu0 0
  %218 = vmatprep.subr.bf16.mxu0 0
  %219 = vmatpush1.bf16.msra.mxu0 0
  %220 = vmatprep.mubr.bf16.mxu0 0
  %221 = vmatmul.mubr.bf16.gmra.mrb[0].mxu0 %v79
  %v222 = vpop.f32.mrb[0].mxu0
  %v223 = vadd.f32 %v34, %v222
  %v224 = vpop.f32.mrb[0].mxu0
  %v225 = vpop.f32.mrb[0].mxu0
  %v226 = vpop.f32.mrb[0].mxu0
  %227 = vdwg.mxu0
  %v228 = vmax.f32 %v223, 0.0
  %v229 = vpack.c.bf16 %v228, %v228
  %s230 = scalar_lea.vmem %s3, 2
  %231 = vst.msk [vmem:[%s230] sm:$0x3] %vm127, %v229
  // Predicated region
  $region14: #{unet_forward_pallas.8} parent=0 // pred_check
    _
  $region15: #{unet_forward_pallas.8} parent=0 // pred_check_branch
    %233 = sbr.rel (0) target = $region17
  $region16: #{unet_forward_pallas.8} parent=0 // pred_region
    _
  $region17: #{unet_forward_pallas.8} parent=0 // pred_fallthru
    _
  // Predicated region
  $region18: #{unet_forward_pallas.8} parent=0 // pred_check
    _
  $region19: #{unet_forward_pallas.8} parent=0 // pred_check_branch
    %235 = sbr.rel (0) target = $region21
  $region20: #{unet_forward_pallas.8} parent=0 // pred_region
    _
  $region21: #{unet_forward_pallas.8} parent=0 // pred_fallthru
    _

// kernel: unet_forward_pallas.9
$region0: #{unet_forward_pallas.9}
  #allocation0 [shape = 'u32[]', space=smem, size = 0x4, offset = 0x4, fixed_abs, tag = 'smem constant byte address 0x4 - core index']
  #allocation1 [shape = 'u32[144,128]{1,0:T(1,128)}', space=vmem, size = 0x12000, scoped, tag = 'internal scratch']
  %s0 = inlined_call_operand.vmem [shape: bf16[2,108,27], index: 0, kind: input, shape index: {}]
  %s1 = inlined_call_operand.vmem [shape: bf16[8,108], index: 1, kind: input, shape index: {}]
  %s2 = inlined_call_operand.vmem [shape: f32[8,1], index: 2, kind: input, shape index: {}]
  %s3 = inlined_call_operand.vmem [shape: bf16[2,8,27], index: 3, kind: output, shape index: {}]
  %s4 = sld [smem:[#allocation0]]
  $region22: #{unet_forward_pallas.9} parent=0
    _
  %s6 = ssub.s32 1, %s4
  %s7 = scalar_select 0, %s6, %s4
  // Predicated region
  $region2: #{unet_forward_pallas.9} parent=0 // pred_check
    _
  $region3: #{unet_forward_pallas.9} parent=0 // pred_check_branch
    %9 = sbr.rel (0) target = $region5
  $region4: #{unet_forward_pallas.9} parent=0 // pred_region
    _
  $region5: #{unet_forward_pallas.9} parent=0 // pred_fallthru
    _
  // Predicated region
  $region6: #{unet_forward_pallas.9} parent=0 // pred_check
    _
  $region7: #{unet_forward_pallas.9} parent=0 // pred_check_branch
    %11 = sbr.rel (0) target = $region9
  $region8: #{unet_forward_pallas.9} parent=0 // pred_region
    _
  $region9: #{unet_forward_pallas.9} parent=0 // pred_fallthru
    _
  // Predicated region
  $region10: #{unet_forward_pallas.9} parent=0 // pred_check
    _
  $region11: #{unet_forward_pallas.9} parent=0 // pred_check_branch
    %13 = sbr.rel (0) target = $region13
  $region12: #{unet_forward_pallas.9} parent=0 // pred_region
    _
  $region13: #{unet_forward_pallas.9} parent=0 // pred_fallthru
    _
  %v15 = vld [vmem:[%s1] sm:$0xf]
  %v16 = vld [vmem:[%s2] sm:$0xff]
  %v17 = vld [vmem:[%s0] sm:$0xf]
  %v18 = vld [vmem:[%s0 + $0x4] sm:$0xf]
  %v19 = vld [vmem:[%s0 + $0x8] sm:$0xf]
  %v20 = vld [vmem:[%s0 + $0xc] sm:$0xf]
  %v21 = vld [vmem:[%s0 + $0x10] sm:$0xf]
  %v22 = vld [vmem:[%s0 + $0x14] sm:$0xf]
  %v23 = vld [vmem:[%s0 + $0x18] sm:$0xf]
  %v24 = vld [vmem:[%s0 + $0x1c] sm:$0xf]
  %v25 = vld [vmem:[%s0 + $0x20] sm:$0xf]
  %v26 = vld [vmem:[%s0 + $0x24] sm:$0xf]
  %v27 = vld [vmem:[%s0 + $0x28] sm:$0xf]
  %v28 = vld [vmem:[%s0 + $0x2c] sm:$0xf]
  %v29 = vld [vmem:[%s0 + $0x30] sm:$0xf]
  %v30 = vld [vmem:[%s0 + $0x34] sm:$0x3]
  %32 = vset.pattern.permute.xlu0 0
  %33 = vperm.xlu0 %32, %v16
  %v34 = vpop.permute.xlu0 %33
  %v50 = vunpack.c.l.b16 %v17
  %v51 = vunpack.c.l.b16 %v18
  %v52 = vunpack.c.l.b16 %v19
  %v53 = vunpack.c.l.b16 %v20
  %v54 = vunpack.c.l.b16 %v21
  %v55 = vunpack.c.l.b16 %v22
  %v56 = vunpack.c.l.b16 %v23
  %v57 = vunpack.c.l.b16 %v24
  %v58 = vunpack.c.l.b16 %v25
  %v59 = vunpack.c.l.b16 %v26
  %v60 = vunpack.c.l.b16 %v27
  %v61 = vunpack.c.l.b16 %v28
  %v62 = vunpack.c.l.b16 %v29
  %v63 = vunpack.c.l.b16 %v30
  %v64 = vpack.c.b16 %v51, %v50
  %v65 = vpack.c.b16 %v53, %v52
  %v66 = vpack.c.b16 %v55, %v54
  %v67 = vpack.c.b16 %v57, %v56
  %v68 = vpack.c.b16 %v59, %v58
  %v69 = vpack.c.b16 %v61, %v60
  %v70 = vpack.c.b16 %v63, %v62
  %vm77 = vcmask 883712
  %v79 = vsel %vm77, %v15, 0
  %vm81 = vcmask 1045504
  %v83 = vsel %vm81, %v70, 0
  %85 = vmatprep.subr.bf16.mxu0 0
  %86 = vmatpush1.bf16.msra.mxu0 %v64
  %87 = vmatprep.subr.bf16.mxu0 0
  %88 = vmatpush1.bf16.msra.mxu0 %v65
  %89 = vmatprep.subr.bf16.mxu0 0
  %90 = vmatpush1.bf16.msra.mxu0 %v66
  %91 = vmatprep.subr.bf16.mxu0 0
  %92 = vmatpush1.bf16.msra.mxu0 %v67
  %93 = vmatprep.subr.bf16.mxu0 0
  %94 = vmatpush1.bf16.msra.mxu0 %v68
  %95 = vmatprep.subr.bf16.mxu0 0
  %96 = vmatpush1.bf16.msra.mxu0 %v69
  %97 = vmatprep.subr.bf16.mxu0 0
  %98 = vmatpush1.bf16.msra.mxu0 %v83
  %99 = vmatprep.subr.bf16.mxu0 0
  %100 = vmatpush1.bf16.msra.mxu0 0
  %101 = vmatprep.subr.bf16.mxu0 0
  %102 = vmatpush1.bf16.msra.mxu0 0
  %103 = vmatprep.subr.bf16.mxu0 0
  %104 = vmatpush1.bf16.msra.mxu0 0
  %105 = vmatprep.subr.bf16.mxu0 0
  %106 = vmatpush1.bf16.msra.mxu0 0
  %107 = vmatprep.subr.bf16.mxu0 0
  %108 = vmatpush1.bf16.msra.mxu0 0
  %109 = vmatprep.subr.bf16.mxu0 0
  %110 = vmatpush1.bf16.msra.mxu0 0
  %111 = vmatprep.subr.bf16.mxu0 0
  %112 = vmatpush1.bf16.msra.mxu0 0
  %113 = vmatprep.subr.bf16.mxu0 0
  %114 = vmatpush1.bf16.msra.mxu0 0
  %115 = vmatprep.subr.bf16.mxu0 0
  %116 = vmatpush1.bf16.msra.mxu0 0
  %117 = vmatprep.mubr.bf16.mxu0 0
  %118 = vmatmul.mubr.bf16.gmra.mrb[0].mxu0 %v79
  %v119 = vpop.f32.mrb[0].mxu0
  %v120 = vadd.f32 %v34, %v119
  %v121 = vpop.f32.mrb[0].mxu0
  %v122 = vpop.f32.mrb[0].mxu0
  %v123 = vpop.f32.mrb[0].mxu0
  %124 = vdwg.mxu0
  %v125 = vmax.f32 %v120, 0.0
  %v126 = vpack.c.bf16 %v125, %v125
  %vm127 = vcmask 216064
  %128 = vst.msk [vmem:[%s3] sm:$0xf] %vm127, %v126
  %s129 = scalar_lea.vmem %s0, 56
  %v130 = vld [vmem:[%s129] sm:$0xf]
  %v131 = vld [vmem:[%s129 + $0x4] sm:$0xf]
  %v132 = vld [vmem:[%s129 + $0x8] sm:$0xf]
  %v133 = vld [vmem:[%s129 + $0xc] sm:$0xf]
  %v134 = vld [vmem:[%s129 + $0x10] sm:$0xf]
  %v135 = vld [vmem:[%s129 + $0x14] sm:$0xf]
  %v136 = vld [vmem:[%s129 + $0x18] sm:$0xf]
  %v137 = vld [vmem:[%s129 + $0x1c] sm:$0xf]
  %v138 = vld [vmem:[%s129 + $0x20] sm:$0xf]
  %v139 = vld [vmem:[%s129 + $0x24] sm:$0xf]
  %v140 = vld [vmem:[%s129 + $0x28] sm:$0xf]
  %v141 = vld [vmem:[%s129 + $0x2c] sm:$0xf]
  %v142 = vld [vmem:[%s129 + $0x30] sm:$0xf]
  %v143 = vld [vmem:[%s129 + $0x34] sm:$0x3]
  %v158 = vunpack.c.l.b16 %v130
  %v159 = vunpack.c.l.b16 %v131
  %v160 = vunpack.c.l.b16 %v132
  %v161 = vunpack.c.l.b16 %v133
  %v162 = vunpack.c.l.b16 %v134
  %v163 = vunpack.c.l.b16 %v135
  %v164 = vunpack.c.l.b16 %v136
  %v165 = vunpack.c.l.b16 %v137
  %v166 = vunpack.c.l.b16 %v138
  %v167 = vunpack.c.l.b16 %v139
  %v168 = vunpack.c.l.b16 %v140
  %v169 = vunpack.c.l.b16 %v141
  %v170 = vunpack.c.l.b16 %v142
  %v171 = vunpack.c.l.b16 %v143
  %v172 = vpack.c.b16 %v159, %v158
  %v173 = vpack.c.b16 %v161, %v160
  %v174 = vpack.c.b16 %v163, %v162
  %v175 = vpack.c.b16 %v165, %v164
  %v176 = vpack.c.b16 %v167, %v166
  %v177 = vpack.c.b16 %v169, %v168
  %v178 = vpack.c.b16 %v171, %v170
  %v186 = vsel %vm81, %v178, 0
  %188 = vmatprep.subr.bf16.mxu0 0
  %189 = vmatpush1.bf16.msra.mxu0 %v172
  %190 = vmatprep.subr.bf16.mxu0 0
  %191 = vmatpush1.bf16.msra.mxu0 %v173
  %192 = vmatprep.subr.bf16.mxu0 0
  %193 = vmatpush1.bf16.msra.mxu0 %v174
  %194 = vmatprep.subr.bf16.mxu0 0
  %195 = vmatpush1.bf16.msra.mxu0 %v175
  %196 = vmatprep.subr.bf16.mxu0 0
  %197 = vmatpush1.bf16.msra.mxu0 %v176
  %198 = vmatprep.subr.bf16.mxu0 0
  %199 = vmatpush1.bf16.msra.mxu0 %v177
  %200 = vmatprep.subr.bf16.mxu0 0
  %201 = vmatpush1.bf16.msra.mxu0 %v186
  %202 = vmatprep.subr.bf16.mxu0 0
  %203 = vmatpush1.bf16.msra.mxu0 0
  %204 = vmatprep.subr.bf16.mxu0 0
  %205 = vmatpush1.bf16.msra.mxu0 0
  %206 = vmatprep.subr.bf16.mxu0 0
  %207 = vmatpush1.bf16.msra.mxu0 0
  %208 = vmatprep.subr.bf16.mxu0 0
  %209 = vmatpush1.bf16.msra.mxu0 0
  %210 = vmatprep.subr.bf16.mxu0 0
  %211 = vmatpush1.bf16.msra.mxu0 0
  %212 = vmatprep.subr.bf16.mxu0 0
  %213 = vmatpush1.bf16.msra.mxu0 0
  %214 = vmatprep.subr.bf16.mxu0 0
  %215 = vmatpush1.bf16.msra.mxu0 0
  %216 = vmatprep.subr.bf16.mxu0 0
  %217 = vmatpush1.bf16.msra.mxu0 0
  %218 = vmatprep.subr.bf16.mxu0 0
  %219 = vmatpush1.bf16.msra.mxu0 0
  %220 = vmatprep.mubr.bf16.mxu0 0
  %221 = vmatmul.mubr.bf16.gmra.mrb[0].mxu0 %v79
  %v222 = vpop.f32.mrb[0].mxu0
  %v223 = vadd.f32 %v34, %v222
  %v224 = vpop.f32.mrb[0].mxu0
  %v225 = vpop.f32.mrb[0].mxu0
  %v226 = vpop.f32.mrb[0].mxu0
  %227 = vdwg.mxu0
  %v228 = vmax.f32 %v223, 0.0
  %v229 = vpack.c.bf16 %v228, %v228
  %s230 = scalar_lea.vmem %s3, 4
  %231 = vst.msk [vmem:[%s230] sm:$0xf] %vm127, %v229
  // Predicated region
  $region14: #{unet_forward_pallas.9} parent=0 // pred_check
    _
  $region15: #{unet_forward_pallas.9} parent=0 // pred_check_branch
    %233 = sbr.rel (0) target = $region17
  $region16: #{unet_forward_pallas.9} parent=0 // pred_region
    _
  $region17: #{unet_forward_pallas.9} parent=0 // pred_fallthru
    _
  // Predicated region
  $region18: #{unet_forward_pallas.9} parent=0 // pred_check
    _
  $region19: #{unet_forward_pallas.9} parent=0 // pred_check_branch
    %235 = sbr.rel (0) target = $region21
  $region20: #{unet_forward_pallas.9} parent=0 // pred_region
    _
  $region21: #{unet_forward_pallas.9} parent=0 // pred_fallthru
    _

// kernel: unet_forward_pallas.10
$region0: #{unet_forward_pallas.10}
  #allocation0 [shape = 'u32[]', space=smem, size = 0x4, offset = 0x4, fixed_abs, tag = 'smem constant byte address 0x4 - core index']
  #allocation1 [shape = 'u32[144,128]{1,0:T(1,128)}', space=vmem, size = 0x12000, scoped, tag = 'internal scratch']
  %s0 = inlined_call_operand.vmem [shape: bf16[2,216,8], index: 0, kind: input, shape index: {}]
  %s1 = inlined_call_operand.vmem [shape: bf16[8,216], index: 1, kind: input, shape index: {}]
  %s2 = inlined_call_operand.vmem [shape: f32[8,1], index: 2, kind: input, shape index: {}]
  %s3 = inlined_call_operand.vmem [shape: bf16[2,8,8], index: 3, kind: output, shape index: {}]
  %s4 = sld [smem:[#allocation0]]
  $region22: #{unet_forward_pallas.10} parent=0
    _
  %s6 = ssub.s32 1, %s4
  %s7 = scalar_select 0, %s6, %s4
  // Predicated region
  $region2: #{unet_forward_pallas.10} parent=0 // pred_check
    _
  $region3: #{unet_forward_pallas.10} parent=0 // pred_check_branch
    %9 = sbr.rel (0) target = $region5
  $region4: #{unet_forward_pallas.10} parent=0 // pred_region
    _
  $region5: #{unet_forward_pallas.10} parent=0 // pred_fallthru
    _
  // Predicated region
  $region6: #{unet_forward_pallas.10} parent=0 // pred_check
    _
  $region7: #{unet_forward_pallas.10} parent=0 // pred_check_branch
    %11 = sbr.rel (0) target = $region9
  $region8: #{unet_forward_pallas.10} parent=0 // pred_region
    _
  $region9: #{unet_forward_pallas.10} parent=0 // pred_fallthru
    _
  // Predicated region
  $region10: #{unet_forward_pallas.10} parent=0 // pred_check
    _
  $region11: #{unet_forward_pallas.10} parent=0 // pred_check_branch
    %13 = sbr.rel (0) target = $region13
  $region12: #{unet_forward_pallas.10} parent=0 // pred_region
    _
  $region13: #{unet_forward_pallas.10} parent=0 // pred_fallthru
    _
  %v15 = vld [vmem:[%s1] sm:$0xff]
  %v16 = vld [vmem:[%s2] sm:$0xff]
  %v17 = vld [vmem:[%s0] sm:$0xf]
  %v18 = vld [vmem:[%s0 + $0x4] sm:$0xf]
  %v19 = vld [vmem:[%s0 + $0x8] sm:$0xf]
  %v20 = vld [vmem:[%s0 + $0xc] sm:$0xf]
  %v21 = vld [vmem:[%s0 + $0x10] sm:$0xf]
  %v22 = vld [vmem:[%s0 + $0x14] sm:$0xf]
  %v23 = vld [vmem:[%s0 + $0x18] sm:$0xf]
  %v24 = vld [vmem:[%s0 + $0x1c] sm:$0xf]
  %v25 = vld [vmem:[%s0 + $0x20] sm:$0xf]
  %v26 = vld [vmem:[%s0 + $0x24] sm:$0xf]
  %v27 = vld [vmem:[%s0 + $0x28] sm:$0xf]
  %v28 = vld [vmem:[%s0 + $0x2c] sm:$0xf]
  %v29 = vld [vmem:[%s0 + $0x30] sm:$0xf]
  %v30 = vld [vmem:[%s0 + $0x34] sm:$0xf]
  %v31 = vld [vmem:[%s0 + $0x38] sm:$0xf]
  %v32 = vld [vmem:[%s0 + $0x3c] sm:$0xf]
  %v33 = vld [vmem:[%s0 + $0x40] sm:$0xf]
  %v34 = vld [vmem:[%s0 + $0x44] sm:$0xf]
  %v35 = vld [vmem:[%s0 + $0x48] sm:$0xf]
  %v36 = vld [vmem:[%s0 + $0x4c] sm:$0xf]
  %v37 = vld [vmem:[%s0 + $0x50] sm:$0xf]
  %v38 = vld [vmem:[%s0 + $0x54] sm:$0xf]
  %v39 = vld [vmem:[%s0 + $0x58] sm:$0xf]
  %v40 = vld [vmem:[%s0 + $0x5c] sm:$0xf]
  %v41 = vld [vmem:[%s0 + $0x60] sm:$0xf]
  %v42 = vld [vmem:[%s0 + $0x64] sm:$0xf]
  %v43 = vld [vmem:[%s0 + $0x68] sm:$0xf]
  %45 = vset.pattern.permute.xlu0 0
  %46 = vperm.xlu0 %45, %v16
  %v47 = vpop.permute.xlu0 %46
  %v50 = vunpack.c.l.b16 %v15
  %v51 = vunpack.c.h.b16 %v15
  %v52 = vpack.c.b16 %v50, %v50
  %v53 = vpack.c.b16 %v51, %v51
  %v82 = vunpack.c.l.b16 %v17
  %v83 = vunpack.c.l.b16 %v18
  %v84 = vunpack.c.l.b16 %v19
  %v85 = vunpack.c.l.b16 %v20
  %v86 = vunpack.c.l.b16 %v21
  %v87 = vunpack.c.l.b16 %v22
  %v88 = vunpack.c.l.b16 %v23
  %v89 = vunpack.c.l.b16 %v24
  %v90 = vunpack.c.l.b16 %v25
  %v91 = vunpack.c.l.b16 %v26
  %v92 = vunpack.c.l.b16 %v27
  %v93 = vunpack.c.l.b16 %v28
  %v94 = vunpack.c.l.b16 %v29
  %v95 = vunpack.c.l.b16 %v30
  %v96 = vunpack.c.l.b16 %v31
  %v97 = vunpack.c.l.b16 %v32
  %v98 = vunpack.c.l.b16 %v33
  %v99 = vunpack.c.l.b16 %v34
  %v100 = vunpack.c.l.b16 %v35
  %v101 = vunpack.c.l.b16 %v36
  %v102 = vunpack.c.l.b16 %v37
  %v103 = vunpack.c.l.b16 %v38
  %v104 = vunpack.c.l.b16 %v39
  %v105 = vunpack.c.l.b16 %v40
  %v106 = vunpack.c.l.b16 %v41
  %v107 = vunpack.c.l.b16 %v42
  %v108 = vunpack.c.l.b16 %v43
  %v109 = vpack.c.b16 %v83, %v82
  %v110 = vpack.c.b16 %v85, %v84
  %v111 = vpack.c.b16 %v87, %v86
  %v112 = vpack.c.b16 %v89, %v88
  %v113 = vpack.c.b16 %v91, %v90
  %v114 = vpack.c.b16 %v93, %v92
  %v115 = vpack.c.b16 %v95, %v94
  %v116 = vpack.c.b16 %v97, %v96
  %v117 = vpack.c.b16 %v99, %v98
  %v118 = vpack.c.b16 %v101, %v100
  %v119 = vpack.c.b16 %v103, %v102
  %v120 = vpack.c.b16 %v105, %v104
  %v121 = vpack.c.b16 %v107, %v106
  %v122 = vpack.c.b16 %v108, %v108
  %vm136 = vcmask 719872
  %v138 = vsel %vm136, %v53, 0
  %vm140 = vcmask 1043456
  %v142 = vsel %vm140, %v122, 0
  %144 = vmatprep.subr.bf16.mxu0 0
  %145 = vmatpush1.bf16.msra.mxu0 %v109
  %146 = vmatprep.subr.bf16.mxu0 0
  %147 = vmatpush1.bf16.msra.mxu0 %v110
  %148 = vmatprep.subr.bf16.mxu0 0
  %149 = vmatpush1.bf16.msra.mxu0 %v111
  %150 = vmatprep.subr.bf16.mxu0 0
  %151 = vmatpush1.bf16.msra.mxu0 %v112
  %152 = vmatprep.subr.bf16.mxu0 0
  %153 = vmatpush1.bf16.msra.mxu0 %v113
  %154 = vmatprep.subr.bf16.mxu0 0
  %155 = vmatpush1.bf16.msra.mxu0 %v114
  %156 = vmatprep.subr.bf16.mxu0 0
  %157 = vmatpush1.bf16.msra.mxu0 %v115
  %158 = vmatprep.subr.bf16.mxu0 0
  %159 = vmatpush1.bf16.msra.mxu0 %v116
  %160 = vmatprep.subr.bf16.mxu0 0
  %161 = vmatpush1.bf16.msra.mxu0 %v117
  %162 = vmatprep.subr.bf16.mxu0 0
  %163 = vmatpush1.bf16.msra.mxu0 %v118
  %164 = vmatprep.subr.bf16.mxu0 0
  %165 = vmatpush1.bf16.msra.mxu0 %v119
  %166 = vmatprep.subr.bf16.mxu0 0
  %167 = vmatpush1.bf16.msra.mxu0 %v120
  %168 = vmatprep.subr.bf16.mxu0 0
  %169 = vmatpush1.bf16.msra.mxu0 %v121
  %170 = vmatprep.subr.bf16.mxu0 0
  %171 = vmatpush1.bf16.msra.mxu0 %v142
  %172 = vmatprep.subr.bf16.mxu0 0
  %173 = vmatpush1.bf16.msra.mxu0 0
  %174 = vmatprep.subr.bf16.mxu0 0
  %175 = vmatpush1.bf16.msra.mxu0 0
  %176 = vmatprep.mubr.bf16.mxu0 %v138
  %177 = vmatmul.mubr.bf16.gmra.mrb[0].mxu0 %v52
  %v178 = vpop.f32.mrb[0].mxu0
  %v179 = vadd.f32 %v47, %v178
  %v180 = vpop.f32.mrb[0].mxu0
  %v181 = vpop.f32.mrb[0].mxu0
  %v182 = vpop.f32.mrb[0].mxu0
  %183 = vdwg.mxu0
  %v184 = vmax.f32 %v179, 0.0
  %v185 = vpack.c.bf16 %v184, %v184
  %vm186 = vcmask 60416
  %187 = vst.msk [vmem:[%s3] sm:$0xf] %vm186, %v185
  %s188 = scalar_lea.vmem %s0, 108
  %v189 = vld [vmem:[%s188] sm:$0xf]
  %v190 = vld [vmem:[%s188 + $0x4] sm:$0xf]
  %v191 = vld [vmem:[%s188 + $0x8] sm:$0xf]
  %v192 = vld [vmem:[%s188 + $0xc] sm:$0xf]
  %v193 = vld [vmem:[%s188 + $0x10] sm:$0xf]
  %v194 = vld [vmem:[%s188 + $0x14] sm:$0xf]
  %v195 = vld [vmem:[%s188 + $0x18] sm:$0xf]
  %v196 = vld [vmem:[%s188 + $0x1c] sm:$0xf]
  %v197 = vld [vmem:[%s188 + $0x20] sm:$0xf]
  %v198 = vld [vmem:[%s188 + $0x24] sm:$0xf]
  %v199 = vld [vmem:[%s188 + $0x28] sm:$0xf]
  %v200 = vld [vmem:[%s188 + $0x2c] sm:$0xf]
  %v201 = vld [vmem:[%s188 + $0x30] sm:$0xf]
  %v202 = vld [vmem:[%s188 + $0x34] sm:$0xf]
  %v203 = vld [vmem:[%s188 + $0x38] sm:$0xf]
  %v204 = vld [vmem:[%s188 + $0x3c] sm:$0xf]
  %v205 = vld [vmem:[%s188 + $0x40] sm:$0xf]
  %v206 = vld [vmem:[%s188 + $0x44] sm:$0xf]
  %v207 = vld [vmem:[%s188 + $0x48] sm:$0xf]
  %v208 = vld [vmem:[%s188 + $0x4c] sm:$0xf]
  %v209 = vld [vmem:[%s188 + $0x50] sm:$0xf]
  %v210 = vld [vmem:[%s188 + $0x54] sm:$0xf]
  %v211 = vld [vmem:[%s188 + $0x58] sm:$0xf]
  %v212 = vld [vmem:[%s188 + $0x5c] sm:$0xf]
  %v213 = vld [vmem:[%s188 + $0x60] sm:$0xf]
  %v214 = vld [vmem:[%s188 + $0x64] sm:$0xf]
  %v215 = vld [vmem:[%s188 + $0x68] sm:$0xf]
  %v243 = vunpack.c.l.b16 %v189
  %v244 = vunpack.c.l.b16 %v190
  %v245 = vunpack.c.l.b16 %v191
  %v246 = vunpack.c.l.b16 %v192
  %v247 = vunpack.c.l.b16 %v193
  %v248 = vunpack.c.l.b16 %v194
  %v249 = vunpack.c.l.b16 %v195
  %v250 = vunpack.c.l.b16 %v196
  %v251 = vunpack.c.l.b16 %v197
  %v252 = vunpack.c.l.b16 %v198
  %v253 = vunpack.c.l.b16 %v199
  %v254 = vunpack.c.l.b16 %v200
  %v255 = vunpack.c.l.b16 %v201
  %v256 = vunpack.c.l.b16 %v202
  %v257 = vunpack.c.l.b16 %v203
  %v258 = vunpack.c.l.b16 %v204
  %v259 = vunpack.c.l.b16 %v205
  %v260 = vunpack.c.l.b16 %v206
  %v261 = vunpack.c.l.b16 %v207
  %v262 = vunpack.c.l.b16 %v208
  %v263 = vunpack.c.l.b16 %v209
  %v264 = vunpack.c.l.b16 %v210
  %v265 = vunpack.c.l.b16 %v211
  %v266 = vunpack.c.l.b16 %v212
  %v267 = vunpack.c.l.b16 %v213
  %v268 = vunpack.c.l.b16 %v214
  %v269 = vunpack.c.l.b16 %v215
  %v270 = vpack.c.b16 %v244, %v243
  %v271 = vpack.c.b16 %v246, %v245
  %v272 = vpack.c.b16 %v248, %v247
  %v273 = vpack.c.b16 %v250, %v249
  %v274 = vpack.c.b16 %v252, %v251
  %v275 = vpack.c.b16 %v254, %v253
  %v276 = vpack.c.b16 %v256, %v255
  %v277 = vpack.c.b16 %v258, %v257
  %v278 = vpack.c.b16 %v260, %v259
  %v279 = vpack.c.b16 %v262, %v261
  %v280 = vpack.c.b16 %v264, %v263
  %v281 = vpack.c.b16 %v266, %v265
  %v282 = vpack.c.b16 %v268, %v267
  %v283 = vpack.c.b16 %v269, %v269
  %v298 = vsel %vm140, %v283, 0
  %300 = vmatprep.subr.bf16.mxu0 0
  %301 = vmatpush1.bf16.msra.mxu0 %v270
  %302 = vmatprep.subr.bf16.mxu0 0
  %303 = vmatpush1.bf16.msra.mxu0 %v271
  %304 = vmatprep.subr.bf16.mxu0 0
  %305 = vmatpush1.bf16.msra.mxu0 %v272
  %306 = vmatprep.subr.bf16.mxu0 0
  %307 = vmatpush1.bf16.msra.mxu0 %v273
  %308 = vmatprep.subr.bf16.mxu0 0
  %309 = vmatpush1.bf16.msra.mxu0 %v274
  %310 = vmatprep.subr.bf16.mxu0 0
  %311 = vmatpush1.bf16.msra.mxu0 %v275
  %312 = vmatprep.subr.bf16.mxu0 0
  %313 = vmatpush1.bf16.msra.mxu0 %v276
  %314 = vmatprep.subr.bf16.mxu0 0
  %315 = vmatpush1.bf16.msra.mxu0 %v277
  %316 = vmatprep.subr.bf16.mxu0 0
  %317 = vmatpush1.bf16.msra.mxu0 %v278
  %318 = vmatprep.subr.bf16.mxu0 0
  %319 = vmatpush1.bf16.msra.mxu0 %v279
  %320 = vmatprep.subr.bf16.mxu0 0
  %321 = vmatpush1.bf16.msra.mxu0 %v280
  %322 = vmatprep.subr.bf16.mxu0 0
  %323 = vmatpush1.bf16.msra.mxu0 %v281
  %324 = vmatprep.subr.bf16.mxu0 0
  %325 = vmatpush1.bf16.msra.mxu0 %v282
  %326 = vmatprep.subr.bf16.mxu0 0
  %327 = vmatpush1.bf16.msra.mxu0 %v298
  %328 = vmatprep.subr.bf16.mxu0 0
  %329 = vmatpush1.bf16.msra.mxu0 0
  %330 = vmatprep.subr.bf16.mxu0 0
  %331 = vmatpush1.bf16.msra.mxu0 0
  %332 = vmatprep.mubr.bf16.mxu0 %v138
  %333 = vmatmul.mubr.bf16.gmra.mrb[0].mxu0 %v52
  %v334 = vpop.f32.mrb[0].mxu0
  %v335 = vadd.f32 %v47, %v334
  %v336 = vpop.f32.mrb[0].mxu0
  %v337 = vpop.f32.mrb[0].mxu0
  %v338 = vpop.f32.mrb[0].mxu0
  %339 = vdwg.mxu0
  %v340 = vmax.f32 %v335, 0.0
  %v341 = vpack.c.bf16 %v340, %v340
  %s342 = scalar_lea.vmem %s3, 4
  %343 = vst.msk [vmem:[%s342] sm:$0xf] %vm186, %v341
  // Predicated region
  $region14: #{unet_forward_pallas.10} parent=0 // pred_check
    _
  $region15: #{unet_forward_pallas.10} parent=0 // pred_check_branch
    %345 = sbr.rel (0) target = $region17
  $region16: #{unet_forward_pallas.10} parent=0 // pred_region
    _
  $region17: #{unet_forward_pallas.10} parent=0 // pred_fallthru
    _
  // Predicated region
  $region18: #{unet_forward_pallas.10} parent=0 // pred_check
    _
  $region19: #{unet_forward_pallas.10} parent=0 // pred_check_branch
    %347 = sbr.rel (0) target = $region21
  $region20: #{unet_forward_pallas.10} parent=0 // pred_region
    _
  $region21: #{unet_forward_pallas.10} parent=0 // pred_fallthru
    _

// kernel: unet_forward_pallas.11
$region0: #{unet_forward_pallas.11}
  #allocation0 [shape = 'u32[]', space=smem, size = 0x4, offset = 0x4, fixed_abs, tag = 'smem constant byte address 0x4 - core index']
  #allocation1 [shape = 'u32[144,128]{1,0:T(1,128)}', space=vmem, size = 0x12000, scoped, tag = 'internal scratch']
  %s0 = inlined_call_operand.vmem [shape: bf16[2,216,125], index: 0, kind: input, shape index: {}]
  %s1 = inlined_call_operand.vmem [shape: bf16[4,216], index: 1, kind: input, shape index: {}]
  %s2 = inlined_call_operand.vmem [shape: f32[4,1], index: 2, kind: input, shape index: {}]
  %s3 = inlined_call_operand.vmem [shape: bf16[2,4,125], index: 3, kind: output, shape index: {}]
  %s4 = sld [smem:[#allocation0]]
  $region22: #{unet_forward_pallas.11} parent=0
    _
  %s6 = ssub.s32 1, %s4
  %s7 = scalar_select 0, %s6, %s4
  // Predicated region
  $region2: #{unet_forward_pallas.11} parent=0 // pred_check
    _
  $region3: #{unet_forward_pallas.11} parent=0 // pred_check_branch
    %9 = sbr.rel (0) target = $region5
  $region4: #{unet_forward_pallas.11} parent=0 // pred_region
    _
  $region5: #{unet_forward_pallas.11} parent=0 // pred_fallthru
    _
  // Predicated region
  $region6: #{unet_forward_pallas.11} parent=0 // pred_check
    _
  $region7: #{unet_forward_pallas.11} parent=0 // pred_check_branch
    %11 = sbr.rel (0) target = $region9
  $region8: #{unet_forward_pallas.11} parent=0 // pred_region
    _
  $region9: #{unet_forward_pallas.11} parent=0 // pred_fallthru
    _
  // Predicated region
  $region10: #{unet_forward_pallas.11} parent=0 // pred_check
    _
  $region11: #{unet_forward_pallas.11} parent=0 // pred_check_branch
    %13 = sbr.rel (0) target = $region13
  $region12: #{unet_forward_pallas.11} parent=0 // pred_region
    _
  $region13: #{unet_forward_pallas.11} parent=0 // pred_fallthru
    _
  %v15 = vld [vmem:[%s1] sm:$0xf]
  %v16 = vld [vmem:[%s2] sm:$0xf]
  %v17 = vld [vmem:[%s0] sm:$0xf]
  %v18 = vld [vmem:[%s0 + $0x4] sm:$0xf]
  %v19 = vld [vmem:[%s0 + $0x8] sm:$0xf]
  %v20 = vld [vmem:[%s0 + $0xc] sm:$0xf]
  %v21 = vld [vmem:[%s0 + $0x10] sm:$0xf]
  %v22 = vld [vmem:[%s0 + $0x14] sm:$0xf]
  %v23 = vld [vmem:[%s0 + $0x18] sm:$0xf]
  %v24 = vld [vmem:[%s0 + $0x1c] sm:$0xf]
  %v25 = vld [vmem:[%s0 + $0x20] sm:$0xf]
  %v26 = vld [vmem:[%s0 + $0x24] sm:$0xf]
  %v27 = vld [vmem:[%s0 + $0x28] sm:$0xf]
  %v28 = vld [vmem:[%s0 + $0x2c] sm:$0xf]
  %v29 = vld [vmem:[%s0 + $0x30] sm:$0xf]
  %v30 = vld [vmem:[%s0 + $0x34] sm:$0xf]
  %v31 = vld [vmem:[%s0 + $0x38] sm:$0xf]
  %v32 = vld [vmem:[%s0 + $0x3c] sm:$0xf]
  %v33 = vld [vmem:[%s0 + $0x40] sm:$0xf]
  %v34 = vld [vmem:[%s0 + $0x44] sm:$0xf]
  %v35 = vld [vmem:[%s0 + $0x48] sm:$0xf]
  %v36 = vld [vmem:[%s0 + $0x4c] sm:$0xf]
  %v37 = vld [vmem:[%s0 + $0x50] sm:$0xf]
  %v38 = vld [vmem:[%s0 + $0x54] sm:$0xf]
  %v39 = vld [vmem:[%s0 + $0x58] sm:$0xf]
  %v40 = vld [vmem:[%s0 + $0x5c] sm:$0xf]
  %v41 = vld [vmem:[%s0 + $0x60] sm:$0xf]
  %v42 = vld [vmem:[%s0 + $0x64] sm:$0xf]
  %v43 = vld [vmem:[%s0 + $0x68] sm:$0xf]
  %45 = vset.pattern.permute.xlu0 0
  %46 = vperm.xlu0 %45, %v16
  %v47 = vpop.permute.xlu0 %46
  %v51 = vunpack.c.l.s4 1983009808
  %v52 = vunpack.c.0.s8 %v51
  %v53 = vlaneseq
  %v54 = vshrl.u32 %v53, 7
  %v55 = vsub.s32 %v52, %v54
  %v56 = vrot.slane %v15, %v55
  %v57 = vcombine.high %v56, %v56
  %v86 = vunpack.c.l.b16 %v17
  %v87 = vunpack.c.l.b16 %v18
  %v88 = vunpack.c.l.b16 %v19
  %v89 = vunpack.c.l.b16 %v20
  %v90 = vunpack.c.l.b16 %v21
  %v91 = vunpack.c.l.b16 %v22
  %v92 = vunpack.c.l.b16 %v23
  %v93 = vunpack.c.l.b16 %v24
  %v94 = vunpack.c.l.b16 %v25
  %v95 = vunpack.c.l.b16 %v26
  %v96 = vunpack.c.l.b16 %v27
  %v97 = vunpack.c.l.b16 %v28
  %v98 = vunpack.c.l.b16 %v29
  %v99 = vunpack.c.l.b16 %v30
  %v100 = vunpack.c.l.b16 %v31
  %v101 = vunpack.c.l.b16 %v32
  %v102 = vunpack.c.l.b16 %v33
  %v103 = vunpack.c.l.b16 %v34
  %v104 = vunpack.c.l.b16 %v35
  %v105 = vunpack.c.l.b16 %v36
  %v106 = vunpack.c.l.b16 %v37
  %v107 = vunpack.c.l.b16 %v38
  %v108 = vunpack.c.l.b16 %v39
  %v109 = vunpack.c.l.b16 %v40
  %v110 = vunpack.c.l.b16 %v41
  %v111 = vunpack.c.l.b16 %v42
  %v112 = vunpack.c.l.b16 %v43
  %v113 = vpack.c.b16 %v87, %v86
  %v114 = vpack.c.b16 %v89, %v88
  %v115 = vpack.c.b16 %v91, %v90
  %v116 = vpack.c.b16 %v93, %v92
  %v117 = vpack.c.b16 %v95, %v94
  %v118 = vpack.c.b16 %v97, %v96
  %v119 = vpack.c.b16 %v99, %v98
  %v120 = vpack.c.b16 %v101, %v100
  %v121 = vpack.c.b16 %v103, %v102
  %v122 = vpack.c.b16 %v105, %v104
  %v123 = vpack.c.b16 %v107, %v106
  %v124 = vpack.c.b16 %v109, %v108
  %v125 = vpack.c.b16 %v111, %v110
  %v126 = vpack.c.b16 %v112, %v112
  %vm140 = vcmask 719872
  %v142 = vsel %vm140, %v57, 0
  %vm144 = vcmask 1043456
  %v146 = vsel %vm144, %v126, 0
  %148 = vmatprep.subr.bf16.mxu0 0
  %149 = vmatpush1.bf16.msra.mxu0 %v113
  %150 = vmatprep.subr.bf16.mxu0 0
  %151 = vmatpush1.bf16.msra.mxu0 %v114
  %152 = vmatprep.subr.bf16.mxu0 0
  %153 = vmatpush1.bf16.msra.mxu0 %v115
  %154 = vmatprep.subr.bf16.mxu0 0
  %155 = vmatpush1.bf16.msra.mxu0 %v116
  %156 = vmatprep.subr.bf16.mxu0 0
  %157 = vmatpush1.bf16.msra.mxu0 %v117
  %158 = vmatprep.subr.bf16.mxu0 0
  %159 = vmatpush1.bf16.msra.mxu0 %v118
  %160 = vmatprep.subr.bf16.mxu0 0
  %161 = vmatpush1.bf16.msra.mxu0 %v119
  %162 = vmatprep.subr.bf16.mxu0 0
  %163 = vmatpush1.bf16.msra.mxu0 %v120
  %164 = vmatprep.subr.bf16.mxu0 0
  %165 = vmatpush1.bf16.msra.mxu0 %v121
  %166 = vmatprep.subr.bf16.mxu0 0
  %167 = vmatpush1.bf16.msra.mxu0 %v122
  %168 = vmatprep.subr.bf16.mxu0 0
  %169 = vmatpush1.bf16.msra.mxu0 %v123
  %170 = vmatprep.subr.bf16.mxu0 0
  %171 = vmatpush1.bf16.msra.mxu0 %v124
  %172 = vmatprep.subr.bf16.mxu0 0
  %173 = vmatpush1.bf16.msra.mxu0 %v125
  %174 = vmatprep.subr.bf16.mxu0 0
  %175 = vmatpush1.bf16.msra.mxu0 %v146
  %176 = vmatprep.subr.bf16.mxu0 0
  %177 = vmatpush1.bf16.msra.mxu0 0
  %178 = vmatprep.subr.bf16.mxu0 0
  %179 = vmatpush1.bf16.msra.mxu0 0
  %180 = vmatprep.mubr.bf16.mxu0 %v142
  %181 = vmatmul.mubr.bf16.gmra.mrb[0].mxu0 %v56
  %v182 = vpop.f32.mrb[0].mxu0
  %v183 = vadd.f32 %v47, %v182
  %v184 = vpop.f32.mrb[0].mxu0
  %v185 = vpop.f32.mrb[0].mxu0
  %v186 = vpop.f32.mrb[0].mxu0
  %187 = vdwg.mxu0
  %v188 = vmax.f32 %v183, 0.0
  %v189 = vpack.c.bf16 %v188, %v188
  %vm190 = vcmask 1016832
  %191 = vst.msk [vmem:[%s3] sm:$0x3] %vm190, %v189
  %s192 = scalar_lea.vmem %s0, 108
  %v193 = vld [vmem:[%s192] sm:$0xf]
  %v194 = vld [vmem:[%s192 + $0x4] sm:$0xf]
  %v195 = vld [vmem:[%s192 + $0x8] sm:$0xf]
  %v196 = vld [vmem:[%s192 + $0xc] sm:$0xf]
  %v197 = vld [vmem:[%s192 + $0x10] sm:$0xf]
  %v198 = vld [vmem:[%s192 + $0x14] sm:$0xf]
  %v199 = vld [vmem:[%s192 + $0x18] sm:$0xf]
  %v200 = vld [vmem:[%s192 + $0x1c] sm:$0xf]
  %v201 = vld [vmem:[%s192 + $0x20] sm:$0xf]
  %v202 = vld [vmem:[%s192 + $0x24] sm:$0xf]
  %v203 = vld [vmem:[%s192 + $0x28] sm:$0xf]
  %v204 = vld [vmem:[%s192 + $0x2c] sm:$0xf]
  %v205 = vld [vmem:[%s192 + $0x30] sm:$0xf]
  %v206 = vld [vmem:[%s192 + $0x34] sm:$0xf]
  %v207 = vld [vmem:[%s192 + $0x38] sm:$0xf]
  %v208 = vld [vmem:[%s192 + $0x3c] sm:$0xf]
  %v209 = vld [vmem:[%s192 + $0x40] sm:$0xf]
  %v210 = vld [vmem:[%s192 + $0x44] sm:$0xf]
  %v211 = vld [vmem:[%s192 + $0x48] sm:$0xf]
  %v212 = vld [vmem:[%s192 + $0x4c] sm:$0xf]
  %v213 = vld [vmem:[%s192 + $0x50] sm:$0xf]
  %v214 = vld [vmem:[%s192 + $0x54] sm:$0xf]
  %v215 = vld [vmem:[%s192 + $0x58] sm:$0xf]
  %v216 = vld [vmem:[%s192 + $0x5c] sm:$0xf]
  %v217 = vld [vmem:[%s192 + $0x60] sm:$0xf]
  %v218 = vld [vmem:[%s192 + $0x64] sm:$0xf]
  %v219 = vld [vmem:[%s192 + $0x68] sm:$0xf]
  %v247 = vunpack.c.l.b16 %v193
  %v248 = vunpack.c.l.b16 %v194
  %v249 = vunpack.c.l.b16 %v195
  %v250 = vunpack.c.l.b16 %v196
  %v251 = vunpack.c.l.b16 %v197
  %v252 = vunpack.c.l.b16 %v198
  %v253 = vunpack.c.l.b16 %v199
  %v254 = vunpack.c.l.b16 %v200
  %v255 = vunpack.c.l.b16 %v201
  %v256 = vunpack.c.l.b16 %v202
  %v257 = vunpack.c.l.b16 %v203
  %v258 = vunpack.c.l.b16 %v204
  %v259 = vunpack.c.l.b16 %v205
  %v260 = vunpack.c.l.b16 %v206
  %v261 = vunpack.c.l.b16 %v207
  %v262 = vunpack.c.l.b16 %v208
  %v263 = vunpack.c.l.b16 %v209
  %v264 = vunpack.c.l.b16 %v210
  %v265 = vunpack.c.l.b16 %v211
  %v266 = vunpack.c.l.b16 %v212
  %v267 = vunpack.c.l.b16 %v213
  %v268 = vunpack.c.l.b16 %v214
  %v269 = vunpack.c.l.b16 %v215
  %v270 = vunpack.c.l.b16 %v216
  %v271 = vunpack.c.l.b16 %v217
  %v272 = vunpack.c.l.b16 %v218
  %v273 = vunpack.c.l.b16 %v219
  %v274 = vpack.c.b16 %v248, %v247
  %v275 = vpack.c.b16 %v250, %v249
  %v276 = vpack.c.b16 %v252, %v251
  %v277 = vpack.c.b16 %v254, %v253
  %v278 = vpack.c.b16 %v256, %v255
  %v279 = vpack.c.b16 %v258, %v257
  %v280 = vpack.c.b16 %v260, %v259
  %v281 = vpack.c.b16 %v262, %v261
  %v282 = vpack.c.b16 %v264, %v263
  %v283 = vpack.c.b16 %v266, %v265
  %v284 = vpack.c.b16 %v268, %v267
  %v285 = vpack.c.b16 %v270, %v269
  %v286 = vpack.c.b16 %v272, %v271
  %v287 = vpack.c.b16 %v273, %v273
  %v302 = vsel %vm144, %v287, 0
  %304 = vmatprep.subr.bf16.mxu0 0
  %305 = vmatpush1.bf16.msra.mxu0 %v274
  %306 = vmatprep.subr.bf16.mxu0 0
  %307 = vmatpush1.bf16.msra.mxu0 %v275
  %308 = vmatprep.subr.bf16.mxu0 0
  %309 = vmatpush1.bf16.msra.mxu0 %v276
  %310 = vmatprep.subr.bf16.mxu0 0
  %311 = vmatpush1.bf16.msra.mxu0 %v277
  %312 = vmatprep.subr.bf16.mxu0 0
  %313 = vmatpush1.bf16.msra.mxu0 %v278
  %314 = vmatprep.subr.bf16.mxu0 0
  %315 = vmatpush1.bf16.msra.mxu0 %v279
  %316 = vmatprep.subr.bf16.mxu0 0
  %317 = vmatpush1.bf16.msra.mxu0 %v280
  %318 = vmatprep.subr.bf16.mxu0 0
  %319 = vmatpush1.bf16.msra.mxu0 %v281
  %320 = vmatprep.subr.bf16.mxu0 0
  %321 = vmatpush1.bf16.msra.mxu0 %v282
  %322 = vmatprep.subr.bf16.mxu0 0
  %323 = vmatpush1.bf16.msra.mxu0 %v283
  %324 = vmatprep.subr.bf16.mxu0 0
  %325 = vmatpush1.bf16.msra.mxu0 %v284
  %326 = vmatprep.subr.bf16.mxu0 0
  %327 = vmatpush1.bf16.msra.mxu0 %v285
  %328 = vmatprep.subr.bf16.mxu0 0
  %329 = vmatpush1.bf16.msra.mxu0 %v286
  %330 = vmatprep.subr.bf16.mxu0 0
  %331 = vmatpush1.bf16.msra.mxu0 %v302
  %332 = vmatprep.subr.bf16.mxu0 0
  %333 = vmatpush1.bf16.msra.mxu0 0
  %334 = vmatprep.subr.bf16.mxu0 0
  %335 = vmatpush1.bf16.msra.mxu0 0
  %336 = vmatprep.mubr.bf16.mxu0 %v142
  %337 = vmatmul.mubr.bf16.gmra.mrb[0].mxu0 %v56
  %v338 = vpop.f32.mrb[0].mxu0
  %v339 = vadd.f32 %v47, %v338
  %v340 = vpop.f32.mrb[0].mxu0
  %v341 = vpop.f32.mrb[0].mxu0
  %v342 = vpop.f32.mrb[0].mxu0
  %343 = vdwg.mxu0
  %v344 = vmax.f32 %v339, 0.0
  %v345 = vpack.c.bf16 %v344, %v344
  %s346 = scalar_lea.vmem %s3, 2
  %347 = vst.msk [vmem:[%s346] sm:$0x3] %vm190, %v345
  // Predicated region
  $region14: #{unet_forward_pallas.11} parent=0 // pred_check
    _
  $region15: #{unet_forward_pallas.11} parent=0 // pred_check_branch
    %349 = sbr.rel (0) target = $region17
  $region16: #{unet_forward_pallas.11} parent=0 // pred_region
    _
  $region17: #{unet_forward_pallas.11} parent=0 // pred_fallthru
    _
  // Predicated region
  $region18: #{unet_forward_pallas.11} parent=0 // pred_check
    _
  $region19: #{unet_forward_pallas.11} parent=0 // pred_check_branch
    %351 = sbr.rel (0) target = $region21
  $region20: #{unet_forward_pallas.11} parent=0 // pred_region
    _
  $region21: #{unet_forward_pallas.11} parent=0 // pred_fallthru
    _

// kernel: unet_forward_pallas.13
$region0: #{unet_forward_pallas.13}
  #allocation0 [shape = 'u32[]', space=smem, size = 0x4, offset = 0x4, fixed_abs, tag = 'smem constant byte address 0x4 - core index']
  #allocation1 [shape = 'u32[144,128]{1,0:T(1,128)}', space=vmem, size = 0x12000, scoped, tag = 'internal scratch']
  %s0 = inlined_call_operand.vmem [shape: bf16[2,108,27], index: 0, kind: input, shape index: {}]
  %s1 = inlined_call_operand.vmem [shape: bf16[2,108], index: 1, kind: input, shape index: {}]
  %s2 = inlined_call_operand.vmem [shape: f32[2,1], index: 2, kind: input, shape index: {}]
  %s3 = inlined_call_operand.vmem [shape: f32[2,2,27], index: 3, kind: output, shape index: {}]
  %s4 = sld [smem:[#allocation0]]
  $region22: #{unet_forward_pallas.13} parent=0
    _
  %s6 = ssub.s32 1, %s4
  %s7 = scalar_select 0, %s6, %s4
  // Predicated region
  $region2: #{unet_forward_pallas.13} parent=0 // pred_check
    _
  $region3: #{unet_forward_pallas.13} parent=0 // pred_check_branch
    %9 = sbr.rel (0) target = $region5
  $region4: #{unet_forward_pallas.13} parent=0 // pred_region
    _
  $region5: #{unet_forward_pallas.13} parent=0 // pred_fallthru
    _
  // Predicated region
  $region6: #{unet_forward_pallas.13} parent=0 // pred_check
    _
  $region7: #{unet_forward_pallas.13} parent=0 // pred_check_branch
    %11 = sbr.rel (0) target = $region9
  $region8: #{unet_forward_pallas.13} parent=0 // pred_region
    _
  $region9: #{unet_forward_pallas.13} parent=0 // pred_fallthru
    _
  // Predicated region
  $region10: #{unet_forward_pallas.13} parent=0 // pred_check
    _
  $region11: #{unet_forward_pallas.13} parent=0 // pred_check_branch
    %13 = sbr.rel (0) target = $region13
  $region12: #{unet_forward_pallas.13} parent=0 // pred_region
    _
  $region13: #{unet_forward_pallas.13} parent=0 // pred_fallthru
    _
  %v15 = vld [vmem:[%s1] sm:$0x1]
  %v16 = vld [vmem:[%s2] sm:$0x3]
  %v17 = vld [vmem:[%s0] sm:$0xf]
  %v18 = vld [vmem:[%s0 + $0x4] sm:$0xf]
  %v19 = vld [vmem:[%s0 + $0x8] sm:$0xf]
  %v20 = vld [vmem:[%s0 + $0xc] sm:$0xf]
  %v21 = vld [vmem:[%s0 + $0x10] sm:$0xf]
  %v22 = vld [vmem:[%s0 + $0x14] sm:$0xf]
  %v23 = vld [vmem:[%s0 + $0x18] sm:$0xf]
  %v24 = vld [vmem:[%s0 + $0x1c] sm:$0xf]
  %v25 = vld [vmem:[%s0 + $0x20] sm:$0xf]
  %v26 = vld [vmem:[%s0 + $0x24] sm:$0xf]
  %v27 = vld [vmem:[%s0 + $0x28] sm:$0xf]
  %v28 = vld [vmem:[%s0 + $0x2c] sm:$0xf]
  %v29 = vld [vmem:[%s0 + $0x30] sm:$0xf]
  %v30 = vld [vmem:[%s0 + $0x34] sm:$0x3]
  %32 = vset.pattern.permute.xlu0 0
  %33 = vperm.xlu0 %32, %v16
  %v34 = vpop.permute.xlu0 %33
  %v50 = vunpack.c.l.b16 %v17
  %v51 = vunpack.c.l.b16 %v18
  %v52 = vunpack.c.l.b16 %v19
  %v53 = vunpack.c.l.b16 %v20
  %v54 = vunpack.c.l.b16 %v21
  %v55 = vunpack.c.l.b16 %v22
  %v56 = vunpack.c.l.b16 %v23
  %v57 = vunpack.c.l.b16 %v24
  %v58 = vunpack.c.l.b16 %v25
  %v59 = vunpack.c.l.b16 %v26
  %v60 = vunpack.c.l.b16 %v27
  %v61 = vunpack.c.l.b16 %v28
  %v62 = vunpack.c.l.b16 %v29
  %v63 = vunpack.c.l.b16 %v30
  %v64 = vpack.c.b16 %v51, %v50
  %v65 = vpack.c.b16 %v53, %v52
  %v66 = vpack.c.b16 %v55, %v54
  %v67 = vpack.c.b16 %v57, %v56
  %v68 = vpack.c.b16 %v59, %v58
  %v69 = vpack.c.b16 %v61, %v60
  %v70 = vpack.c.b16 %v63, %v62
  %vm77 = vcmask 883712
  %v79 = vsel %vm77, %v15, 0
  %vm81 = vcmask 1045504
  %v83 = vsel %vm81, %v70, 0
  %85 = vmatprep.subr.bf16.mxu0 0
  %86 = vmatpush1.bf16.msra.mxu0 %v64
  %87 = vmatprep.subr.bf16.mxu0 0
  %88 = vmatpush1.bf16.msra.mxu0 %v65
  %89 = vmatprep.subr.bf16.mxu0 0
  %90 = vmatpush1.bf16.msra.mxu0 %v66
  %91 = vmatprep.subr.bf16.mxu0 0
  %92 = vmatpush1.bf16.msra.mxu0 %v67
  %93 = vmatprep.subr.bf16.mxu0 0
  %94 = vmatpush1.bf16.msra.mxu0 %v68
  %95 = vmatprep.subr.bf16.mxu0 0
  %96 = vmatpush1.bf16.msra.mxu0 %v69
  %97 = vmatprep.subr.bf16.mxu0 0
  %98 = vmatpush1.bf16.msra.mxu0 %v83
  %99 = vmatprep.subr.bf16.mxu0 0
  %100 = vmatpush1.bf16.msra.mxu0 0
  %101 = vmatprep.subr.bf16.mxu0 0
  %102 = vmatpush1.bf16.msra.mxu0 0
  %103 = vmatprep.subr.bf16.mxu0 0
  %104 = vmatpush1.bf16.msra.mxu0 0
  %105 = vmatprep.subr.bf16.mxu0 0
  %106 = vmatpush1.bf16.msra.mxu0 0
  %107 = vmatprep.subr.bf16.mxu0 0
  %108 = vmatpush1.bf16.msra.mxu0 0
  %109 = vmatprep.subr.bf16.mxu0 0
  %110 = vmatpush1.bf16.msra.mxu0 0
  %111 = vmatprep.subr.bf16.mxu0 0
  %112 = vmatpush1.bf16.msra.mxu0 0
  %113 = vmatprep.subr.bf16.mxu0 0
  %114 = vmatpush1.bf16.msra.mxu0 0
  %115 = vmatprep.subr.bf16.mxu0 0
  %116 = vmatpush1.bf16.msra.mxu0 0
  %117 = vmatprep.mubr.bf16.mxu0 0
  %118 = vmatmul.mubr.bf16.gmra.mrb[0].mxu0 %v79
  %v119 = vpop.f32.mrb[0].mxu0
  %v120 = vadd.f32 %v34, %v119
  %v121 = vpop.f32.mrb[0].mxu0
  %v122 = vpop.f32.mrb[0].mxu0
  %v123 = vpop.f32.mrb[0].mxu0
  %124 = vdwg.mxu0
  %vm125 = vcmask 214016
  %126 = vst.msk [vmem:[%s3] sm:$0x3] %vm125, %v120
  %s127 = scalar_lea.vmem %s0, 56
  %v128 = vld [vmem:[%s127] sm:$0xf]
  %v129 = vld [vmem:[%s127 + $0x4] sm:$0xf]
  %v130 = vld [vmem:[%s127 + $0x8] sm:$0xf]
  %v131 = vld [vmem:[%s127 + $0xc] sm:$0xf]
  %v132 = vld [vmem:[%s127 + $0x10] sm:$0xf]
  %v133 = vld [vmem:[%s127 + $0x14] sm:$0xf]
  %v134 = vld [vmem:[%s127 + $0x18] sm:$0xf]
  %v135 = vld [vmem:[%s127 + $0x1c] sm:$0xf]
  %v136 = vld [vmem:[%s127 + $0x20] sm:$0xf]
  %v137 = vld [vmem:[%s127 + $0x24] sm:$0xf]
  %v138 = vld [vmem:[%s127 + $0x28] sm:$0xf]
  %v139 = vld [vmem:[%s127 + $0x2c] sm:$0xf]
  %v140 = vld [vmem:[%s127 + $0x30] sm:$0xf]
  %v141 = vld [vmem:[%s127 + $0x34] sm:$0x3]
  %v156 = vunpack.c.l.b16 %v128
  %v157 = vunpack.c.l.b16 %v129
  %v158 = vunpack.c.l.b16 %v130
  %v159 = vunpack.c.l.b16 %v131
  %v160 = vunpack.c.l.b16 %v132
  %v161 = vunpack.c.l.b16 %v133
  %v162 = vunpack.c.l.b16 %v134
  %v163 = vunpack.c.l.b16 %v135
  %v164 = vunpack.c.l.b16 %v136
  %v165 = vunpack.c.l.b16 %v137
  %v166 = vunpack.c.l.b16 %v138
  %v167 = vunpack.c.l.b16 %v139
  %v168 = vunpack.c.l.b16 %v140
  %v169 = vunpack.c.l.b16 %v141
  %v170 = vpack.c.b16 %v157, %v156
  %v171 = vpack.c.b16 %v159, %v158
  %v172 = vpack.c.b16 %v161, %v160
  %v173 = vpack.c.b16 %v163, %v162
  %v174 = vpack.c.b16 %v165, %v164
  %v175 = vpack.c.b16 %v167, %v166
  %v176 = vpack.c.b16 %v169, %v168
  %v184 = vsel %vm81, %v176, 0
  %186 = vmatprep.subr.bf16.mxu0 0
  %187 = vmatpush1.bf16.msra.mxu0 %v170
  %188 = vmatprep.subr.bf16.mxu0 0
  %189 = vmatpush1.bf16.msra.mxu0 %v171
  %190 = vmatprep.subr.bf16.mxu0 0
  %191 = vmatpush1.bf16.msra.mxu0 %v172
  %192 = vmatprep.subr.bf16.mxu0 0
  %193 = vmatpush1.bf16.msra.mxu0 %v173
  %194 = vmatprep.subr.bf16.mxu0 0
  %195 = vmatpush1.bf16.msra.mxu0 %v174
  %196 = vmatprep.subr.bf16.mxu0 0
  %197 = vmatpush1.bf16.msra.mxu0 %v175
  %198 = vmatprep.subr.bf16.mxu0 0
  %199 = vmatpush1.bf16.msra.mxu0 %v184
  %200 = vmatprep.subr.bf16.mxu0 0
  %201 = vmatpush1.bf16.msra.mxu0 0
  %202 = vmatprep.subr.bf16.mxu0 0
  %203 = vmatpush1.bf16.msra.mxu0 0
  %204 = vmatprep.subr.bf16.mxu0 0
  %205 = vmatpush1.bf16.msra.mxu0 0
  %206 = vmatprep.subr.bf16.mxu0 0
  %207 = vmatpush1.bf16.msra.mxu0 0
  %208 = vmatprep.subr.bf16.mxu0 0
  %209 = vmatpush1.bf16.msra.mxu0 0
  %210 = vmatprep.subr.bf16.mxu0 0
  %211 = vmatpush1.bf16.msra.mxu0 0
  %212 = vmatprep.subr.bf16.mxu0 0
  %213 = vmatpush1.bf16.msra.mxu0 0
  %214 = vmatprep.subr.bf16.mxu0 0
  %215 = vmatpush1.bf16.msra.mxu0 0
  %216 = vmatprep.subr.bf16.mxu0 0
  %217 = vmatpush1.bf16.msra.mxu0 0
  %218 = vmatprep.mubr.bf16.mxu0 0
  %219 = vmatmul.mubr.bf16.gmra.mrb[0].mxu0 %v79
  %v220 = vpop.f32.mrb[0].mxu0
  %v221 = vadd.f32 %v34, %v220
  %v222 = vpop.f32.mrb[0].mxu0
  %v223 = vpop.f32.mrb[0].mxu0
  %v224 = vpop.f32.mrb[0].mxu0
  %225 = vdwg.mxu0
  %s226 = scalar_lea.vmem %s3, 2
  %227 = vst.msk [vmem:[%s226] sm:$0x3] %vm125, %v221
  // Predicated region
  $region14: #{unet_forward_pallas.13} parent=0 // pred_check
    _
  $region15: #{unet_forward_pallas.13} parent=0 // pred_check_branch
    %229 = sbr.rel (0) target = $region17
  $region16: #{unet_forward_pallas.13} parent=0 // pred_region
    _
  $region17: #{unet_forward_pallas.13} parent=0 // pred_fallthru
    _
  // Predicated region
  $region18: #{unet_forward_pallas.13} parent=0 // pred_check
    _
  $region19: #{unet_forward_pallas.13} parent=0 // pred_check_branch
    %231 = sbr.rel (0) target = $region21
  $region20: #{unet_forward_pallas.13} parent=0 // pred_region
    _
  $region21: #{unet_forward_pallas.13} parent=0 // pred_fallthru
    _

</llo_original>
